<compile_context>
chip_gen: v6e
topology: v6e:2x2x1
jax: 0.10.0
libtpu: 0.0.40
codegen_flags: <defaults>
</compile_context>

<pallas_src>
import functools
import math

import jax
import jax.numpy as jnp
from jax.experimental import pallas as pl
from jax.experimental.pallas import tpu as pltpu

LN_EPS = 1e-5
NEG_INF = -1e30  # finite "minus infinity" (avoids NaN from (-inf) - (-inf))


# ---------------------------------------------------------------------------
# Kernel: grid = (batch_tiles, layers).  The output block index only depends
# on the batch tile, so it stays resident in VMEM across the layer axis and
# acts as the residual-stream carry.
# ---------------------------------------------------------------------------
def _stack_kernel(*refs, n_head, has_attn_mask, mlp_chunks):
    if has_attn_mask:
        (x_ref, kb_ref, ab_ref,
         vecs_ref, wqkv_ref, bqkv_ref, wo_ref, wfc_ref, bfc_ref, wpr_ref,
         o_ref) = refs
    else:
        (x_ref, kb_ref,
         vecs_ref, wqkv_ref, bqkv_ref, wo_ref, wfc_ref, bfc_ref, wpr_ref,
         o_ref) = refs
        ab_ref = None

    layer = pl.program_id(1)

    # Layer 0: seed the VMEM-resident carry from the HBM input.
    @pl.when(layer == 0)
    def _():
        o_ref[...] = x_ref[...]

    x = o_ref[...]                                   # (Bt, Lp, D) f32
    Bt, Lp, D = x.shape
    H = n_head
    hd = D // H
    rows = Bt * Lp

    # Packed per-layer vector params: rows = ln1_w, ln1_b, bo, ln2_w, ln2_b, bpr.
    vec = vecs_ref[0]                                # (8, D) f32
    ln1w, ln1b = vec[0:1], vec[1:2]
    bo_v = vec[2:3]
    ln2w, ln2b = vec[3:4], vec[4:5]
    bpr_v = vec[5:6]

    def layernorm(v, w, b):                          # f32 stats (matches .float())
        mu = jnp.mean(v, axis=-1, keepdims=True)
        var = jnp.mean(jnp.square(v - mu), axis=-1, keepdims=True)
        return (v - mu) * jax.lax.rsqrt(var + LN_EPS) * w + b

    # Additive attention bias, hoisted out of the head loop.
    bias = kb_ref[...]                               # (Bt, 1, Lp)
    if has_attn_mask:
        bias = bias + ab_ref[...]                    # -> (Bt, Lp, Lp)

    # ---- attention branch ---------------------------------------------------
    h = layernorm(x, ln1w, ln1b)                     # (Bt, Lp, D) f32
    h2d = h.reshape(rows, D).astype(jnp.bfloat16)

    # Fused QKV projection (q-scale pre-folded into weights/bias).
    qkv = jnp.dot(h2d, wqkv_ref[0],
                  preferred_element_type=jnp.float32) + bqkv_ref[0]   # (rows, 3D)

    wo_all = wo_ref[0]                               # (H, hd, D) bf16
    attn2d = jnp.zeros((rows, D), jnp.float32)
    for hi in range(H):                              # static loop, H is small
        q0 = hi * hd
        qh = qkv[:, q0:q0 + hd].reshape(Bt, Lp, hd).astype(jnp.bfloat16)
        kh = qkv[:, D + q0:D + q0 + hd].reshape(Bt, Lp, hd).astype(jnp.bfloat16)
        vh = qkv[:, 2 * D + q0:2 * D + q0 + hd].reshape(Bt, Lp, hd).astype(jnp.bfloat16)

        s = jnp.einsum('bqd,bkd->bqk', qh, kh,
                       preferred_element_type=jnp.float32)        # (Bt, Lp, Lp) f32
        s = s + bias
        s = s - jnp.max(s, axis=-1, keepdims=True)
        p = jnp.exp(s)
        denom = jnp.sum(p, axis=-1, keepdims=True)                # (Bt, Lp, 1)

        # Deferred normalization: scale the (Bt,Lp,hd) context, not the
        # (Bt,Lp,Lp) probability matrix.
        ctx = jnp.einsum('bqk,bkd->bqd', p.astype(jnp.bfloat16), vh,
                         preferred_element_type=jnp.float32)       # (Bt, Lp, hd)
        ctx = ctx * pl.reciprocal(denom, approx=True)

        # Output projection folded per head (no lane-axis concat).
        attn2d = attn2d + jnp.dot(
            ctx.reshape(rows, hd).astype(jnp.bfloat16), wo_all[hi],
            preferred_element_type=jnp.float32)
    attn2d = attn2d + bo_v
    x = x + attn2d.reshape(Bt, Lp, D)

    # ---- MLP branch ----------------------------------------------------------
    m = layernorm(x, ln2w, ln2b)
    m2d = m.reshape(rows, D).astype(jnp.bfloat16)
    FF = wfc_ref.shape[-1]                           # 4*D
    if mlp_chunks == 1:
        fc = jnp.dot(m2d, wfc_ref[0],
                     preferred_element_type=jnp.float32) + bfc_ref[0]   # (rows, 4D)
        g = fc * jax.nn.sigmoid(1.702 * fc)                             # QuickGELU
        pr = jnp.dot(g.astype(jnp.bfloat16), wpr_ref[0],
                     preferred_element_type=jnp.float32)                # (rows, D)
    else:
        # Chunk the 4D hidden axis (128-aligned chunks) to bound f32 temporaries.
        chunk = FF // mlp_chunks
        pr = jnp.zeros((rows, D), jnp.float32)
        for c in range(mlp_chunks):
            c0 = c * chunk
            fc = jnp.dot(m2d, wfc_ref[0, :, c0:c0 + chunk],
                         preferred_element_type=jnp.float32) + bfc_ref[0, :, c0:c0 + chunk]
            g = fc * jax.nn.sigmoid(1.702 * fc)
            pr = pr + jnp.dot(g.astype(jnp.bfloat16), wpr_ref[0, c0:c0 + chunk, :],
                              preferred_element_type=jnp.float32)
    x = x + (pr + bpr_v).reshape(Bt, Lp, D)

    o_ref[...] = x


# ---------------------------------------------------------------------------
# pallas_call wrapper + per-generation tiling decisions
# ---------------------------------------------------------------------------
def _round_up(n, m):
    return ((n + m - 1) // m) * m


def _vmem_capacity_bytes():
    """Physical per-core VMEM (128 MiB on v5e/v6e, 64 MiB on v7x)."""
    try:
        info = pltpu.get_tpu_info()
        for attr in ("vmem_capacity_bytes", "vmem_size_bytes", "vmem_bytes"):
            v = getattr(info, attr, None)
            if v:
                return int(v)
    except Exception:
        pass
    return 128 << 20


def _pick_batch_tile(B, Lp, vmem_cap):
    """Largest divisor of B within the rows budget; on 2-core (v7x-like) parts
    keep nb = B/Bt >= 2 and even so both TensorCores stay busy."""
    two_core = vmem_cap < (96 << 20)          # v7x: 64 MiB per TC, 2 TCs/chip
    max_rows = 512 if two_core else 1024      # v5e/v6e: 128 MiB -> bigger tiles
    best = 1
    for c in range(1, B + 1):
        if B % c or c * Lp > max_rows:
            continue
        nb = B // c
        if two_core and B > 1 and (nb < 2 or nb % 2):
            continue
        best = c
    return best


def _mlp_chunks(FF, max_chunk=2048):
    """Number of 128-aligned chunks (<= max_chunk wide) to split the 4D axis."""
    if FF <= max_chunk:
        return 1
    for n in range(2, FF + 1):
        if FF % n:
            continue
        c = FF // n
        if c <= max_chunk and c % 128 == 0:
            return n
    return 1


def _vmem_limit_bytes(Bt, Lp, D, has_am, n_chunks, vmem_cap):
    f32, bf16 = 4, 2
    rows = Bt * Lp
    FF = 4 * D
    chunk = FF // n_chunks
    # Double-buffered per-layer weight blocks (7 DMAs/layer after packing).
    weights = (3 * D * D + D * D + D * FF + FF * D) * bf16 \
        + (8 * D + 3 * D + FF) * f32
    x_blk = rows * D * f32
    kb_blk = Bt * Lp * f32
    ab_blk = Lp * Lp * f32 if has_am else 0
    pipelined = 2 * (weights + x_blk + kb_blk + ab_blk) + 2 * x_blk  # + resident out
    temps = (rows * (8 * D + chunk) * f32
             + rows * (4 * D + chunk) * bf16
             + 3 * Bt * Lp * Lp * f32)
    est = pipelined + temps + (8 << 20)               # compiler headroom
    cap = (vmem_cap * 3) // 4                         # ~48 MiB v7x, ~96 MiB v5e/v6e
    return int(min(max(est, 16 << 20), cap))


def _stack_params(params, n_head):
    """Stack per-layer params: fused bf16 QKV (q-scale folded), per-head Wo,
    and all small D-vectors packed into one (layers, 8, D) f32 array."""
    D = params[0]["wq_t"].shape[0]
    H = n_head
    hd = D // H
    scale = 1.0 / math.sqrt(hd)
    f32, bf16 = jnp.float32, jnp.bfloat16

    def one(p):
        vecs = jnp.zeros((8, D), f32)
        for i, name in enumerate(("ln1_w", "ln1_b", "bo", "ln2_w", "ln2_b", "bpr")):
            vecs = vecs.at[i].set(p[name].astype(f32))
        wqkv = jnp.concatenate([p["wq_t"] * scale, p["wk_t"], p["wv_t"]],
                               axis=1).astype(bf16)                    # (D, 3D)
        bqkv = jnp.concatenate([p["bq"] * scale, p["bk"], p["bv"]]
                               ).reshape(1, 3 * D).astype(f32)         # (1, 3D)
        return {
            "vecs": vecs,
            "wqkv": wqkv,
            "bqkv": bqkv,
            "wo": p["wo_t"].reshape(H, hd, D).astype(bf16),
            "wfc": p["wfc_t"].astype(bf16),
            "bfc": p["bfc"].reshape(1, -1).astype(f32),
            "wpr": p["wpr_t"].astype(bf16),
        }

    per = [one(p) for p in params]
    return {k: jnp.stack([q[k] for q in per]) for k in per[0]}


_WEIGHT_ORDER = ("vecs", "wqkv", "bqkv", "wo", "wfc", "bfc", "wpr")


def _run_stack(x, kb, ab, sp, n_head, Bt, vmem_cap, n_chunks):
    B, Lp, D = x.shape
    n_layers = sp["wqkv"].shape[0]
    nb = B // Bt
    has_am = ab is not None

    bmap = lambda b, l: (b, 0, 0)
    w3map = lambda b, l: (l, 0, 0)
    w4map = lambda b, l: (l, 0, 0, 0)

    in_specs = [
        pl.BlockSpec((Bt, Lp, D), bmap),               # x (read only at layer 0)
        pl.BlockSpec((Bt, 1, Lp), bmap),               # key-padding bias
    ]
    inputs = [x, kb]
    if has_am:
        in_specs.append(pl.BlockSpec((Lp, Lp), lambda b, l: (0, 0)))
        inputs.append(ab)

    for name in _WEIGHT_ORDER:
        arr = sp[name]
        idx_map = w4map if arr.ndim == 4 else w3map
        in_specs.append(pl.BlockSpec((1,) + arr.shape[1:], idx_map))
        inputs.append(arr)

    kernel = functools.partial(_stack_kernel, n_head=n_head,
                               has_attn_mask=has_am, mlp_chunks=n_chunks)

    return pl.pallas_call(
        kernel,
        out_shape=jax.ShapeDtypeStruct((B, Lp, D), jnp.float32),
        grid_spec=pltpu.PrefetchScalarGridSpec(
            num_scalar_prefetch=0,
            grid=(nb, n_layers),                       # layer axis innermost (carry)
            in_specs=in_specs,
            out_specs=pl.BlockSpec((Bt, Lp, D), bmap), # resident across layer axis
        ),
        compiler_params=pltpu.CompilerParams(
            dimension_semantics=("parallel", "arbitrary"),
            vmem_limit_bytes=_vmem_limit_bytes(Bt, Lp, D, has_am, n_chunks, vmem_cap),
        ),
    )(*inputs)


def transformer_forward(x_lbd, padding_mask, params, n_head, attn_mask=None):
    """x_lbd: (L, B, D); padding_mask: (B, L) bool (True=pad) or None;
    attn_mask: (L, L) additive float mask or None.  Returns (L, B, D)."""
    L, B, D = x_lbd.shape
    assert D % n_head == 0, "d_model must be divisible by n_head"

    x = jnp.transpose(x_lbd, (1, 0, 2)).astype(jnp.float32)       # (B, L, D)

    # TODO(synk): for the real model config (L, D multiples of 128) Lp is
    # already lane-dense; we only round to the sublane granule here.
    Lp = _round_up(L, 8)
    if Lp != L:
        x = jnp.pad(x, ((0, 0), (0, Lp - L), (0, 0)))

    # Key bias: NEG_INF for user-padded keys and for sequence-padding keys.
    kb = jnp.zeros((B, Lp), jnp.float32)
    if padding_mask is not None:
        kb = kb.at[:, :L].set(
            jnp.where(padding_mask.astype(bool), NEG_INF, 0.0).astype(jnp.float32))
    if Lp != L:
        kb = kb.at[:, L:].set(NEG_INF)
    kb = kb.reshape(B, 1, Lp)

    if attn_mask is not None:
        ab = jnp.maximum(jnp.asarray(attn_mask, jnp.float32), NEG_INF)
        if Lp != L:
            ab = jnp.pad(ab, ((0, Lp - L), (0, Lp - L)))
    else:
        ab = None

    stacked = _stack_params(params, n_head)
    vmem_cap = _vmem_capacity_bytes()
    Bt = _pick_batch_tile(B, Lp, vmem_cap)
    n_chunks = _mlp_chunks(4 * D)

    out = _run_stack(x, kb, ab, stacked, n_head, Bt, vmem_cap, n_chunks)
    out = out[:, :L, :]
    return jnp.transpose(out, (1, 0, 2)).astype(x_lbd.dtype)


# ---------------------------------------------------------------------------
# Pure-JAX reference (f32), deterministic init, block attn-mask (as in spec)
# ---------------------------------------------------------------------------
def init_params(key, width, layers):
    D = width
    std = 1.0 / math.sqrt(D)
    params = []
    for l in range(layers):
        ks = jax.random.split(jax.random.fold_in(key, l), 8)
        params.append({
            "ln1_w": jnp.ones((D,), jnp.float32),
            "ln1_b": jnp.zeros((D,), jnp.float32),
            "wq_t": std * jax.random.normal(ks[0], (D, D), jnp.float32),
            "bq": 0.02 * jax.random.normal(ks[1], (D,), jnp.float32),
            "wk_t": std * jax.random.normal(ks[2], (D, D), jnp.float32),
            "bk": jnp.zeros((D,), jnp.float32),
            "wv_t": std * jax.random.normal(ks[3], (D, D), jnp.float32),
            "bv": jnp.zeros((D,), jnp.float32),
            "wo_t": std * jax.random.normal(ks[4], (D, D), jnp.float32),
            "bo": jnp.zeros((D,), jnp.float32),
            "ln2_w": jnp.ones((D,), jnp.float32),
            "ln2_b": jnp.zeros((D,), jnp.float32),
            "wfc_t": std * jax.random.normal(ks[5], (D, 4 * D), jnp.float32),
            "bfc": 0.02 * jax.random.normal(ks[6], (4 * D,), jnp.float32),
            "wpr_t": (1.0 / math.sqrt(4 * D)) *
                     jax.random.normal(ks[7], (4 * D, D), jnp.float32),
            "bpr": jnp.zeros((D,), jnp.float32),
        })
    return params


def build_attention_mask(visual_length, attn_window):
    mask = jnp.full((visual_length, visual_length), float("-inf"), jnp.float32)
    for i in range(visual_length // attn_window):
        lo = i * attn_window
        hi = (i + 1) * attn_window
        if hi < visual_length:
            mask = mask.at[lo:hi, lo:hi].set(0.0)
        else:
            mask = mask.at[lo:visual_length, lo:visual_length].set(0.0)
    return mask


def reference_forward(x_lbd, padding_mask, params, n_head, attn_mask=None):
    L, B, D = x_lbd.shape
    H = n_head
    hd = D // H
    scale = 1.0 / math.sqrt(hd)
    x = jnp.transpose(x_lbd, (1, 0, 2)).astype(jnp.float32)

    if padding_mask is not None:
        kb = jnp.where(padding_mask.astype(bool), NEG_INF, 0.0)[:, None, None, :]
    else:
        kb = jnp.zeros((B, 1, 1, L), jnp.float32)
    if attn_mask is not None:
        ab = jnp.maximum(attn_mask.astype(jnp.float32), NEG_INF)[None, None, :, :]
    else:
        ab = jnp.zeros((1, 1, L, L), jnp.float32)

    def ln(v, w, b):
        mu = v.mean(-1, keepdims=True)
        var = ((v - mu) ** 2).mean(-1, keepdims=True)
        return (v - mu) * jax.lax.rsqrt(var + LN_EPS) * w + b

    for p in params:
        h = ln(x, p["ln1_w"], p["ln1_b"])
        q = (h @ p["wq_t"] + p["bq"]) * scale
        k = h @ p["wk_t"] + p["bk"]
        v = h @ p["wv_t"] + p["bv"]
        q = q.reshape(B, L, H, hd)
        k = k.reshape(B, L, H, hd)
        v = v.reshape(B, L, H, hd)
        s = jnp.einsum('bqhd,bkhd->bhqk', q, k) + kb + ab
        pm = jax.nn.softmax(s, axis=-1)
        ctx = jnp.einsum('bhqk,bkhd->bqhd', pm, v).reshape(B, L, D)
        x = x + ctx @ p["wo_t"] + p["bo"]
        h2 = ln(x, p["ln2_w"], p["ln2_b"])
        fc = h2 @ p["wfc_t"] + p["bfc"]
        g = fc * jax.nn.sigmoid(1.702 * fc)
        x = x + g @ p["wpr_t"] + p["bpr"]
    return jnp.transpose(x, (1, 0, 2))


# ---------------------------------------------------------------------------
if __name__ == "__main__":
    width, layers, heads = 32, 2, 4     # visual_width, visual_layers, visual_head
    L, B = 12, 2                        # visual_length (padded to 16 internally)
    attn_window = 4

    key = jax.random.PRNGKey(0)
    kx, kp = jax.random.split(key)
    x = jax.random.normal(kx, (L, B, width), jnp.float32)        # (seq, batch, d_model)
    padding_mask = jnp.zeros((B, L), jnp.bool_).at[1, -2:].set(True)
    attn_mask = build_attention_mask(L, attn_window)
    params = init_params(kp, width, layers)

    # Path 1: matches SingleModel.temporal usage (window attn_mask, no padding mask)
    out1 = jax.block_until_ready(
        transformer_forward(x, None, params, heads, attn_mask=attn_mask))
    ref1 = jax.block_until_ready(
        reference_forward(x, None, params, heads, attn_mask=attn_mask))

    # Path 2: key-padding-mask path (attn_mask=None kernel variant)
    out2 = jax.block_until_ready(
        transformer_forward(x, padding_mask, params, heads, attn_mask=None))
    ref2 = jax.block_until_ready(
        reference_forward(x, padding_mask, params, heads, attn_mask=None))

    assert out1.shape == (L, B, width) and out2.shape == (L, B, width)
    assert bool(jnp.all(jnp.isfinite(out1))) and bool(jnp.all(jnp.isfinite(out2)))
    err1 = float(jnp.max(jnp.abs(out1 - ref1)))
    err2 = float(jnp.max(jnp.abs(out2 - ref2)))
    # bf16 matmul operands + approx reciprocal vs f32 reference -> small drift
    assert err1 < 0.25 and err2 < 0.25, (err1, err2)
    print("KERNEL_OK")
</pallas_src>

<mosaic_0001>
module attributes {stable_mosaic.version = 11 : i64} {
  func.func @_stack_kernel(%arg0: i32, %arg1: i32, %arg2: memref<2x16x32xf32, #tpu.memory_space<vmem>>, %arg3: memref<2x1x16xf32, #tpu.memory_space<vmem>>, %arg4: memref<16x16xf32, #tpu.memory_space<vmem>>, %arg5: memref<1x8x32xf32, #tpu.memory_space<vmem>>, %arg6: memref<1x32x96xbf16, #tpu.memory_space<vmem>>, %arg7: memref<1x1x96xf32, #tpu.memory_space<vmem>>, %arg8: memref<1x4x8x32xbf16, #tpu.memory_space<vmem>>, %arg9: memref<1x32x128xbf16, #tpu.memory_space<vmem>>, %arg10: memref<1x1x128xf32, #tpu.memory_space<vmem>>, %arg11: memref<1x128x32xbf16, #tpu.memory_space<vmem>>, %arg12: memref<2x16x32xf32, #tpu.memory_space<vmem>>) attributes {dimension_semantics = [#tpu.dimension_semantics<parallel>, #tpu.dimension_semantics<arbitrary>], iteration_bounds = array<i64: 1, 2>, scalar_prefetch = 0 : i64, scratch_operands = 0 : i64, tpu.core_type = #tpu.core_type<tc>, window_params = [{transform_indices = @transform_0, window_bounds = array<i64: 2, 16, 32>}, {transform_indices = @transform_1, window_bounds = array<i64: 2, 1, 16>}, {pipeline_mode = #tpu.pipeline_mode<synchronous>, transform_indices = @transform_2, window_bounds = array<i64: 16, 16>}, {transform_indices = @transform_3, window_bounds = array<i64: 1, 8, 32>}, {transform_indices = @transform_4, window_bounds = array<i64: 1, 32, 96>}, {transform_indices = @transform_5, window_bounds = array<i64: 1, 1, 96>}, {transform_indices = @transform_6, window_bounds = array<i64: 1, 4, 8, 32>}, {transform_indices = @transform_7, window_bounds = array<i64: 1, 32, 128>}, {transform_indices = @transform_8, window_bounds = array<i64: 1, 1, 128>}, {transform_indices = @transform_9, window_bounds = array<i64: 1, 128, 32>}, {transform_indices = @transform_10, window_bounds = array<i64: 2, 16, 32>}]} {
    %c0_i32 = arith.constant 0 : i32
    %0 = arith.cmpi eq, %arg1, %c0_i32 : i32
    %1 = arith.extui %0 : i1 to i32
    %c0_i32_0 = arith.constant 0 : i32
    %2 = arith.cmpi ne, %1, %c0_i32_0 : i32
    scf.if %2 {
      %c0_68 = arith.constant 0 : index
      %c0_69 = arith.constant 0 : index
      %c0_70 = arith.constant 0 : index
      %224 = vector.load %arg2[%c0_68, %c0_69, %c0_70] : memref<2x16x32xf32, #tpu.memory_space<vmem>>, vector<2x16x32xf32>
      %c0_71 = arith.constant 0 : index
      %c0_72 = arith.constant 0 : index
      %c0_73 = arith.constant 0 : index
      %225 = vector.load %arg12[%c0_71, %c0_72, %c0_73] : memref<2x16x32xf32, #tpu.memory_space<vmem>>, vector<2x16x32xf32>
      tpu.vector_store %arg12[%c0_71, %c0_72, %c0_73], %224 {strides = array<i32>} : memref<2x16x32xf32, #tpu.memory_space<vmem>>, vector<2x16x32xf32>,
    } else {
    }
    %c0 = arith.constant 0 : index
    %c0_1 = arith.constant 0 : index
    %c0_2 = arith.constant 0 : index
    %3 = vector.load %arg12[%c0, %c0_1, %c0_2] : memref<2x16x32xf32, #tpu.memory_space<vmem>>, vector<2x16x32xf32>
    %c0_3 = arith.constant 0 : index
    %c0_4 = arith.constant 0 : index
    %c0_5 = arith.constant 0 : index
    %4 = vector.load %arg5[%c0_3, %c0_4, %c0_5] : memref<1x8x32xf32, #tpu.memory_space<vmem>>, vector<1x8x32xf32>
    %5 = vector.shape_cast %4 : vector<1x8x32xf32> to vector<8x32xf32>
    %6 = vector.extract_strided_slice %5 {offsets = [0, 0], sizes = [1, 32], strides = [1, 1]} : vector<8x32xf32> to vector<1x32xf32>
    %7 = vector.extract_strided_slice %5 {offsets = [1, 0], sizes = [1, 32], strides = [1, 1]} : vector<8x32xf32> to vector<1x32xf32>
    %8 = vector.extract_strided_slice %5 {offsets = [2, 0], sizes = [1, 32], strides = [1, 1]} : vector<8x32xf32> to vector<1x32xf32>
    %9 = vector.extract_strided_slice %5 {offsets = [3, 0], sizes = [1, 32], strides = [1, 1]} : vector<8x32xf32> to vector<1x32xf32>
    %10 = vector.extract_strided_slice %5 {offsets = [4, 0], sizes = [1, 32], strides = [1, 1]} : vector<8x32xf32> to vector<1x32xf32>
    %11 = vector.extract_strided_slice %5 {offsets = [5, 0], sizes = [1, 32], strides = [1, 1]} : vector<8x32xf32> to vector<1x32xf32>
    %c0_6 = arith.constant 0 : index
    %c0_7 = arith.constant 0 : index
    %c0_8 = arith.constant 0 : index
    %12 = vector.load %arg3[%c0_6, %c0_7, %c0_8] : memref<2x1x16xf32, #tpu.memory_space<vmem>>, vector<2x1x16xf32>
    %c0_9 = arith.constant 0 : index
    %c0_10 = arith.constant 0 : index
    %13 = vector.load %arg4[%c0_9, %c0_10] : memref<16x16xf32, #tpu.memory_space<vmem>>, vector<16x16xf32>
    %14 = vector.shape_cast %13 : vector<16x16xf32> to vector<1x16x16xf32>
    %15 = vector.broadcast %12 : vector<2x1x16xf32> to vector<2x16x16xf32>
    %16 = vector.broadcast %14 : vector<1x16x16xf32> to vector<2x16x16xf32>
    %17 = arith.addf %15, %16 : vector<2x16x16xf32>
    %cst = arith.constant dense<0.000000e+00> : vector<2x16xf32>
    %18 = vector.multi_reduction <add>, %3, %cst [2] : vector<2x16x32xf32> to vector<2x16xf32>
    %19 = vector.shape_cast %18 : vector<2x16xf32> to vector<2x16x1xf32>
    %cst_11 = arith.constant 3.200000e+01 : f32
    %20 = vector.broadcast %cst_11 : f32 to vector<2x16x1xf32>
    %21 = arith.divf %19, %20 : vector<2x16x1xf32>
    %22 = vector.broadcast %21 : vector<2x16x1xf32> to vector<2x16x32xf32>
    %23 = arith.subf %3, %22 : vector<2x16x32xf32>
    %24 = arith.mulf %23, %23 : vector<2x16x32xf32>
    %cst_12 = arith.constant dense<0.000000e+00> : vector<2x16xf32>
    %25 = vector.multi_reduction <add>, %24, %cst_12 [2] : vector<2x16x32xf32> to vector<2x16xf32>
    %26 = vector.shape_cast %25 : vector<2x16xf32> to vector<2x16x1xf32>
    %cst_13 = arith.constant 3.200000e+01 : f32
    %27 = vector.broadcast %cst_13 : f32 to vector<2x16x1xf32>
    %28 = arith.divf %26, %27 : vector<2x16x1xf32>
    %29 = vector.broadcast %21 : vector<2x16x1xf32> to vector<2x16x32xf32>
    %30 = arith.subf %3, %29 : vector<2x16x32xf32>
    %cst_14 = arith.constant 9.99999974E-6 : f32
    %31 = vector.broadcast %cst_14 : f32 to vector<2x16x1xf32>
    %32 = arith.addf %28, %31 : vector<2x16x1xf32>
    %33 = math.rsqrt %32 : vector<2x16x1xf32>
    %34 = vector.broadcast %33 : vector<2x16x1xf32> to vector<2x16x32xf32>
    %35 = arith.mulf %30, %34 : vector<2x16x32xf32>
    %36 = vector.shape_cast %6 : vector<1x32xf32> to vector<1x1x32xf32>
    %37 = vector.broadcast %36 : vector<1x1x32xf32> to vector<2x16x32xf32>
    %38 = arith.mulf %35, %37 : vector<2x16x32xf32>
    %39 = vector.shape_cast %7 : vector<1x32xf32> to vector<1x1x32xf32>
    %40 = vector.broadcast %39 : vector<1x1x32xf32> to vector<2x16x32xf32>
    %41 = arith.addf %38, %40 : vector<2x16x32xf32>
    %42 = vector.shape_cast %41 : vector<2x16x32xf32> to vector<32x32xf32>
    %43 = arith.truncf %42 : vector<32x32xf32> to vector<32x32xbf16>
    %c0_15 = arith.constant 0 : index
    %c0_16 = arith.constant 0 : index
    %c0_17 = arith.constant 0 : index
    %44 = vector.load %arg6[%c0_15, %c0_16, %c0_17] : memref<1x32x96xbf16, #tpu.memory_space<vmem>>, vector<1x32x96xbf16>
    %45 = vector.shape_cast %44 : vector<1x32x96xbf16> to vector<32x96xbf16>
    %cst_18 = arith.constant dense<0.000000e+00> : vector<32x96xf32>
    %46 = tpu.matmul %43, %45, %cst_18 {dimension_numbers = #tpu.dot_dimension_numbers<[1], [0], [0], [1], [0, 0, 1, 1], [], []>} : vector<32x32xbf16>, vector<32x96xbf16>, vector<32x96xf32> -> vector<32x96xf32>
    %c0_19 = arith.constant 0 : index
    %c0_20 = arith.constant 0 : index
    %c0_21 = arith.constant 0 : index
    %47 = vector.load %arg7[%c0_19, %c0_20, %c0_21] : memref<1x1x96xf32, #tpu.memory_space<vmem>>, vector<1x1x96xf32>
    %48 = vector.shape_cast %47 : vector<1x1x96xf32> to vector<1x96xf32>
    %49 = vector.broadcast %48 : vector<1x96xf32> to vector<32x96xf32>
    %50 = arith.addf %46, %49 : vector<32x96xf32>
    %c0_22 = arith.constant 0 : index
    %c0_23 = arith.constant 0 : index
    %c0_24 = arith.constant 0 : index
    %c0_25 = arith.constant 0 : index
    %51 = vector.load %arg8[%c0_22, %c0_23, %c0_24, %c0_25] : memref<1x4x8x32xbf16, #tpu.memory_space<vmem>>, vector<1x4x8x32xbf16>
    %52 = vector.shape_cast %51 : vector<1x4x8x32xbf16> to vector<4x8x32xbf16>
    %cst_26 = arith.constant 0.000000e+00 : f32
    %53 = vector.broadcast %cst_26 : f32 to vector<32x32xf32>
    %54 = vector.extract_strided_slice %50 {offsets = [0, 0], sizes = [32, 8], strides = [1, 1]} : vector<32x96xf32> to vector<32x8xf32>
    %55 = vector.shape_cast %54 : vector<32x8xf32> to vector<2x16x8xf32>
    %56 = arith.truncf %55 : vector<2x16x8xf32> to vector<2x16x8xbf16>
    %57 = vector.extract_strided_slice %50 {offsets = [0, 32], sizes = [32, 8], strides = [1, 1]} : vector<32x96xf32> to vector<32x8xf32>
    %58 = vector.shape_cast %57 : vector<32x8xf32> to vector<2x16x8xf32>
    %59 = arith.truncf %58 : vector<2x16x8xf32> to vector<2x16x8xbf16>
    %60 = vector.extract_strided_slice %50 {offsets = [0, 64], sizes = [32, 8], strides = [1, 1]} : vector<32x96xf32> to vector<32x8xf32>
    %61 = vector.shape_cast %60 : vector<32x8xf32> to vector<2x16x8xf32>
    %62 = arith.truncf %61 : vector<2x16x8xf32> to vector<2x16x8xbf16>
    "tpu.trace_start"() <{level = 10 : i32, message = "bqd,bkd->bqk"}> : () -> ()
    %cst_27 = arith.constant dense<0.000000e+00> : vector<2x16x16xf32>
    %63 = tpu.matmul %56, %59, %cst_27 {dimension_numbers = #tpu.dot_dimension_numbers<[2], [2], [1], [1], [0, 0, 0, 1, 1, 1], [0], [0]>} : vector<2x16x8xbf16>, vector<2x16x8xbf16>, vector<2x16x16xf32> -> vector<2x16x16xf32>
    "tpu.trace_stop"() : () -> ()
    %64 = arith.addf %63, %17 : vector<2x16x16xf32>
    %cst_28 = arith.constant dense<0xFF800000> : vector<2x16xf32>
    %65 = vector.multi_reduction <maximumf>, %64, %cst_28 [2] : vector<2x16x16xf32> to vector<2x16xf32>
    %66 = vector.shape_cast %65 : vector<2x16xf32> to vector<2x16x1xf32>
    %67 = vector.broadcast %66 : vector<2x16x1xf32> to vector<2x16x16xf32>
    %68 = arith.subf %64, %67 : vector<2x16x16xf32>
    %69 = math.exp %68 : vector<2x16x16xf32>
    %cst_29 = arith.constant dense<0.000000e+00> : vector<2x16xf32>
    %70 = vector.multi_reduction <add>, %69, %cst_29 [2] : vector<2x16x16xf32> to vector<2x16xf32>
    %71 = vector.shape_cast %70 : vector<2x16xf32> to vector<2x16x1xf32>
    %72 = arith.truncf %69 : vector<2x16x16xf32> to vector<2x16x16xbf16>
    "tpu.trace_start"() <{level = 10 : i32, message = "bqk,bkd->bqd"}> : () -> ()
    %cst_30 = arith.constant dense<0.000000e+00> : vector<2x16x8xf32>
    %73 = tpu.matmul %72, %62, %cst_30 {dimension_numbers = #tpu.dot_dimension_numbers<[2], [1], [1], [2], [0, 0, 0, 1, 1, 2], [0], [0]>} : vector<2x16x16xbf16>, vector<2x16x8xbf16>, vector<2x16x8xf32> -> vector<2x16x8xf32>
    "tpu.trace_stop"() : () -> ()
    %74 = tpu.reciprocal %71 {approx = true} : vector<2x16x1xf32> -> vector<2x16x1xf32>
    %75 = vector.broadcast %74 : vector<2x16x1xf32> to vector<2x16x8xf32>
    %76 = arith.mulf %73, %75 : vector<2x16x8xf32>
    %77 = vector.shape_cast %76 : vector<2x16x8xf32> to vector<32x8xf32>
    %78 = arith.truncf %77 : vector<32x8xf32> to vector<32x8xbf16>
    %79 = vector.extract_strided_slice %52 {offsets = [0, 0, 0], sizes = [1, 8, 32], strides = [1, 1, 1]} : vector<4x8x32xbf16> to vector<1x8x32xbf16>
    %80 = vector.shape_cast %79 : vector<1x8x32xbf16> to vector<8x32xbf16>
    %cst_31 = arith.constant dense<0.000000e+00> : vector<32x32xf32>
    %81 = tpu.matmul %78, %80, %cst_31 {dimension_numbers = #tpu.dot_dimension_numbers<[1], [0], [0], [1], [0, 0, 1, 1], [], []>} : vector<32x8xbf16>, vector<8x32xbf16>, vector<32x32xf32> -> vector<32x32xf32>
    %82 = arith.addf %53, %81 : vector<32x32xf32>
    %83 = vector.extract_strided_slice %50 {offsets = [0, 8], sizes = [32, 8], strides = [1, 1]} : vector<32x96xf32> to vector<32x8xf32>
    %84 = vector.shape_cast %83 : vector<32x8xf32> to vector<2x16x8xf32>
    %85 = arith.truncf %84 : vector<2x16x8xf32> to vector<2x16x8xbf16>
    %86 = vector.extract_strided_slice %50 {offsets = [0, 40], sizes = [32, 8], strides = [1, 1]} : vector<32x96xf32> to vector<32x8xf32>
    %87 = vector.shape_cast %86 : vector<32x8xf32> to vector<2x16x8xf32>
    %88 = arith.truncf %87 : vector<2x16x8xf32> to vector<2x16x8xbf16>
    %89 = vector.extract_strided_slice %50 {offsets = [0, 72], sizes = [32, 8], strides = [1, 1]} : vector<32x96xf32> to vector<32x8xf32>
    %90 = vector.shape_cast %89 : vector<32x8xf32> to vector<2x16x8xf32>
    %91 = arith.truncf %90 : vector<2x16x8xf32> to vector<2x16x8xbf16>
    "tpu.trace_start"() <{level = 10 : i32, message = "bqd,bkd->bqk"}> : () -> ()
    %cst_32 = arith.constant dense<0.000000e+00> : vector<2x16x16xf32>
    %92 = tpu.matmul %85, %88, %cst_32 {dimension_numbers = #tpu.dot_dimension_numbers<[2], [2], [1], [1], [0, 0, 0, 1, 1, 1], [0], [0]>} : vector<2x16x8xbf16>, vector<2x16x8xbf16>, vector<2x16x16xf32> -> vector<2x16x16xf32>
    "tpu.trace_stop"() : () -> ()
    %93 = arith.addf %92, %17 : vector<2x16x16xf32>
    %cst_33 = arith.constant dense<0xFF800000> : vector<2x16xf32>
    %94 = vector.multi_reduction <maximumf>, %93, %cst_33 [2] : vector<2x16x16xf32> to vector<2x16xf32>
    %95 = vector.shape_cast %94 : vector<2x16xf32> to vector<2x16x1xf32>
    %96 = vector.broadcast %95 : vector<2x16x1xf32> to vector<2x16x16xf32>
    %97 = arith.subf %93, %96 : vector<2x16x16xf32>
    %98 = math.exp %97 : vector<2x16x16xf32>
    %cst_34 = arith.constant dense<0.000000e+00> : vector<2x16xf32>
    %99 = vector.multi_reduction <add>, %98, %cst_34 [2] : vector<2x16x16xf32> to vector<2x16xf32>
    %100 = vector.shape_cast %99 : vector<2x16xf32> to vector<2x16x1xf32>
    %101 = arith.truncf %98 : vector<2x16x16xf32> to vector<2x16x16xbf16>
    "tpu.trace_start"() <{level = 10 : i32, message = "bqk,bkd->bqd"}> : () -> ()
    %cst_35 = arith.constant dense<0.000000e+00> : vector<2x16x8xf32>
    %102 = tpu.matmul %101, %91, %cst_35 {dimension_numbers = #tpu.dot_dimension_numbers<[2], [1], [1], [2], [0, 0, 0, 1, 1, 2], [0], [0]>} : vector<2x16x16xbf16>, vector<2x16x8xbf16>, vector<2x16x8xf32> -> vector<2x16x8xf32>
    "tpu.trace_stop"() : () -> ()
    %103 = tpu.reciprocal %100 {approx = true} : vector<2x16x1xf32> -> vector<2x16x1xf32>
    %104 = vector.broadcast %103 : vector<2x16x1xf32> to vector<2x16x8xf32>
    %105 = arith.mulf %102, %104 : vector<2x16x8xf32>
    %106 = vector.shape_cast %105 : vector<2x16x8xf32> to vector<32x8xf32>
    %107 = arith.truncf %106 : vector<32x8xf32> to vector<32x8xbf16>
    %108 = vector.extract_strided_slice %52 {offsets = [1, 0, 0], sizes = [1, 8, 32], strides = [1, 1, 1]} : vector<4x8x32xbf16> to vector<1x8x32xbf16>
    %109 = vector.shape_cast %108 : vector<1x8x32xbf16> to vector<8x32xbf16>
    %cst_36 = arith.constant dense<0.000000e+00> : vector<32x32xf32>
    %110 = tpu.matmul %107, %109, %cst_36 {dimension_numbers = #tpu.dot_dimension_numbers<[1], [0], [0], [1], [0, 0, 1, 1], [], []>} : vector<32x8xbf16>, vector<8x32xbf16>, vector<32x32xf32> -> vector<32x32xf32>
    %111 = arith.addf %82, %110 : vector<32x32xf32>
    %112 = vector.extract_strided_slice %50 {offsets = [0, 16], sizes = [32, 8], strides = [1, 1]} : vector<32x96xf32> to vector<32x8xf32>
    %113 = vector.shape_cast %112 : vector<32x8xf32> to vector<2x16x8xf32>
    %114 = arith.truncf %113 : vector<2x16x8xf32> to vector<2x16x8xbf16>
    %115 = vector.extract_strided_slice %50 {offsets = [0, 48], sizes = [32, 8], strides = [1, 1]} : vector<32x96xf32> to vector<32x8xf32>
    %116 = vector.shape_cast %115 : vector<32x8xf32> to vector<2x16x8xf32>
    %117 = arith.truncf %116 : vector<2x16x8xf32> to vector<2x16x8xbf16>
    %118 = vector.extract_strided_slice %50 {offsets = [0, 80], sizes = [32, 8], strides = [1, 1]} : vector<32x96xf32> to vector<32x8xf32>
    %119 = vector.shape_cast %118 : vector<32x8xf32> to vector<2x16x8xf32>
    %120 = arith.truncf %119 : vector<2x16x8xf32> to vector<2x16x8xbf16>
    "tpu.trace_start"() <{level = 10 : i32, message = "bqd,bkd->bqk"}> : () -> ()
    %cst_37 = arith.constant dense<0.000000e+00> : vector<2x16x16xf32>
    %121 = tpu.matmul %114, %117, %cst_37 {dimension_numbers = #tpu.dot_dimension_numbers<[2], [2], [1], [1], [0, 0, 0, 1, 1, 1], [0], [0]>} : vector<2x16x8xbf16>, vector<2x16x8xbf16>, vector<2x16x16xf32> -> vector<2x16x16xf32>
    "tpu.trace_stop"() : () -> ()
    %122 = arith.addf %121, %17 : vector<2x16x16xf32>
    %cst_38 = arith.constant dense<0xFF800000> : vector<2x16xf32>
    %123 = vector.multi_reduction <maximumf>, %122, %cst_38 [2] : vector<2x16x16xf32> to vector<2x16xf32>
    %124 = vector.shape_cast %123 : vector<2x16xf32> to vector<2x16x1xf32>
    %125 = vector.broadcast %124 : vector<2x16x1xf32> to vector<2x16x16xf32>
    %126 = arith.subf %122, %125 : vector<2x16x16xf32>
    %127 = math.exp %126 : vector<2x16x16xf32>
    %cst_39 = arith.constant dense<0.000000e+00> : vector<2x16xf32>
    %128 = vector.multi_reduction <add>, %127, %cst_39 [2] : vector<2x16x16xf32> to vector<2x16xf32>
    %129 = vector.shape_cast %128 : vector<2x16xf32> to vector<2x16x1xf32>
    %130 = arith.truncf %127 : vector<2x16x16xf32> to vector<2x16x16xbf16>
    "tpu.trace_start"() <{level = 10 : i32, message = "bqk,bkd->bqd"}> : () -> ()
    %cst_40 = arith.constant dense<0.000000e+00> : vector<2x16x8xf32>
    %131 = tpu.matmul %130, %120, %cst_40 {dimension_numbers = #tpu.dot_dimension_numbers<[2], [1], [1], [2], [0, 0, 0, 1, 1, 2], [0], [0]>} : vector<2x16x16xbf16>, vector<2x16x8xbf16>, vector<2x16x8xf32> -> vector<2x16x8xf32>
    "tpu.trace_stop"() : () -> ()
    %132 = tpu.reciprocal %129 {approx = true} : vector<2x16x1xf32> -> vector<2x16x1xf32>
    %133 = vector.broadcast %132 : vector<2x16x1xf32> to vector<2x16x8xf32>
    %134 = arith.mulf %131, %133 : vector<2x16x8xf32>
    %135 = vector.shape_cast %134 : vector<2x16x8xf32> to vector<32x8xf32>
    %136 = arith.truncf %135 : vector<32x8xf32> to vector<32x8xbf16>
    %137 = vector.extract_strided_slice %52 {offsets = [2, 0, 0], sizes = [1, 8, 32], strides = [1, 1, 1]} : vector<4x8x32xbf16> to vector<1x8x32xbf16>
    %138 = vector.shape_cast %137 : vector<1x8x32xbf16> to vector<8x32xbf16>
    %cst_41 = arith.constant dense<0.000000e+00> : vector<32x32xf32>
    %139 = tpu.matmul %136, %138, %cst_41 {dimension_numbers = #tpu.dot_dimension_numbers<[1], [0], [0], [1], [0, 0, 1, 1], [], []>} : vector<32x8xbf16>, vector<8x32xbf16>, vector<32x32xf32> -> vector<32x32xf32>
    %140 = arith.addf %111, %139 : vector<32x32xf32>
    %141 = vector.extract_strided_slice %50 {offsets = [0, 24], sizes = [32, 8], strides = [1, 1]} : vector<32x96xf32> to vector<32x8xf32>
    %142 = vector.shape_cast %141 : vector<32x8xf32> to vector<2x16x8xf32>
    %143 = arith.truncf %142 : vector<2x16x8xf32> to vector<2x16x8xbf16>
    %144 = vector.extract_strided_slice %50 {offsets = [0, 56], sizes = [32, 8], strides = [1, 1]} : vector<32x96xf32> to vector<32x8xf32>
    %145 = vector.shape_cast %144 : vector<32x8xf32> to vector<2x16x8xf32>
    %146 = arith.truncf %145 : vector<2x16x8xf32> to vector<2x16x8xbf16>
    %147 = vector.extract_strided_slice %50 {offsets = [0, 88], sizes = [32, 8], strides = [1, 1]} : vector<32x96xf32> to vector<32x8xf32>
    %148 = vector.shape_cast %147 : vector<32x8xf32> to vector<2x16x8xf32>
    %149 = arith.truncf %148 : vector<2x16x8xf32> to vector<2x16x8xbf16>
    "tpu.trace_start"() <{level = 10 : i32, message = "bqd,bkd->bqk"}> : () -> ()
    %cst_42 = arith.constant dense<0.000000e+00> : vector<2x16x16xf32>
    %150 = tpu.matmul %143, %146, %cst_42 {dimension_numbers = #tpu.dot_dimension_numbers<[2], [2], [1], [1], [0, 0, 0, 1, 1, 1], [0], [0]>} : vector<2x16x8xbf16>, vector<2x16x8xbf16>, vector<2x16x16xf32> -> vector<2x16x16xf32>
    "tpu.trace_stop"() : () -> ()
    %151 = arith.addf %150, %17 : vector<2x16x16xf32>
    %cst_43 = arith.constant dense<0xFF800000> : vector<2x16xf32>
    %152 = vector.multi_reduction <maximumf>, %151, %cst_43 [2] : vector<2x16x16xf32> to vector<2x16xf32>
    %153 = vector.shape_cast %152 : vector<2x16xf32> to vector<2x16x1xf32>
    %154 = vector.broadcast %153 : vector<2x16x1xf32> to vector<2x16x16xf32>
    %155 = arith.subf %151, %154 : vector<2x16x16xf32>
    %156 = math.exp %155 : vector<2x16x16xf32>
    %cst_44 = arith.constant dense<0.000000e+00> : vector<2x16xf32>
    %157 = vector.multi_reduction <add>, %156, %cst_44 [2] : vector<2x16x16xf32> to vector<2x16xf32>
    %158 = vector.shape_cast %157 : vector<2x16xf32> to vector<2x16x1xf32>
    %159 = arith.truncf %156 : vector<2x16x16xf32> to vector<2x16x16xbf16>
    "tpu.trace_start"() <{level = 10 : i32, message = "bqk,bkd->bqd"}> : () -> ()
    %cst_45 = arith.constant dense<0.000000e+00> : vector<2x16x8xf32>
    %160 = tpu.matmul %159, %149, %cst_45 {dimension_numbers = #tpu.dot_dimension_numbers<[2], [1], [1], [2], [0, 0, 0, 1, 1, 2], [0], [0]>} : vector<2x16x16xbf16>, vector<2x16x8xbf16>, vector<2x16x8xf32> -> vector<2x16x8xf32>
    "tpu.trace_stop"() : () -> ()
    %161 = tpu.reciprocal %158 {approx = true} : vector<2x16x1xf32> -> vector<2x16x1xf32>
    %162 = vector.broadcast %161 : vector<2x16x1xf32> to vector<2x16x8xf32>
    %163 = arith.mulf %160, %162 : vector<2x16x8xf32>
    %164 = vector.shape_cast %163 : vector<2x16x8xf32> to vector<32x8xf32>
    %165 = arith.truncf %164 : vector<32x8xf32> to vector<32x8xbf16>
    %166 = vector.extract_strided_slice %52 {offsets = [3, 0, 0], sizes = [1, 8, 32], strides = [1, 1, 1]} : vector<4x8x32xbf16> to vector<1x8x32xbf16>
    %167 = vector.shape_cast %166 : vector<1x8x32xbf16> to vector<8x32xbf16>
    %cst_46 = arith.constant dense<0.000000e+00> : vector<32x32xf32>
    %168 = tpu.matmul %165, %167, %cst_46 {dimension_numbers = #tpu.dot_dimension_numbers<[1], [0], [0], [1], [0, 0, 1, 1], [], []>} : vector<32x8xbf16>, vector<8x32xbf16>, vector<32x32xf32> -> vector<32x32xf32>
    %169 = arith.addf %140, %168 : vector<32x32xf32>
    %170 = vector.broadcast %8 : vector<1x32xf32> to vector<32x32xf32>
    %171 = arith.addf %169, %170 : vector<32x32xf32>
    %172 = vector.shape_cast %171 : vector<32x32xf32> to vector<2x16x32xf32>
    %173 = arith.addf %3, %172 : vector<2x16x32xf32>
    %cst_47 = arith.constant dense<0.000000e+00> : vector<2x16xf32>
    %174 = vector.multi_reduction <add>, %173, %cst_47 [2] : vector<2x16x32xf32> to vector<2x16xf32>
    %175 = vector.shape_cast %174 : vector<2x16xf32> to vector<2x16x1xf32>
    %cst_48 = arith.constant 3.200000e+01 : f32
    %176 = vector.broadcast %cst_48 : f32 to vector<2x16x1xf32>
    %177 = arith.divf %175, %176 : vector<2x16x1xf32>
    %178 = vector.broadcast %177 : vector<2x16x1xf32> to vector<2x16x32xf32>
    %179 = arith.subf %173, %178 : vector<2x16x32xf32>
    %180 = arith.mulf %179, %179 : vector<2x16x32xf32>
    %cst_49 = arith.constant dense<0.000000e+00> : vector<2x16xf32>
    %181 = vector.multi_reduction <add>, %180, %cst_49 [2] : vector<2x16x32xf32> to vector<2x16xf32>
    %182 = vector.shape_cast %181 : vector<2x16xf32> to vector<2x16x1xf32>
    %cst_50 = arith.constant 3.200000e+01 : f32
    %183 = vector.broadcast %cst_50 : f32 to vector<2x16x1xf32>
    %184 = arith.divf %182, %183 : vector<2x16x1xf32>
    %185 = vector.broadcast %177 : vector<2x16x1xf32> to vector<2x16x32xf32>
    %186 = arith.subf %173, %185 : vector<2x16x32xf32>
    %cst_51 = arith.constant 9.99999974E-6 : f32
    %187 = vector.broadcast %cst_51 : f32 to vector<2x16x1xf32>
    %188 = arith.addf %184, %187 : vector<2x16x1xf32>
    %189 = math.rsqrt %188 : vector<2x16x1xf32>
    %190 = vector.broadcast %189 : vector<2x16x1xf32> to vector<2x16x32xf32>
    %191 = arith.mulf %186, %190 : vector<2x16x32xf32>
    %192 = vector.shape_cast %9 : vector<1x32xf32> to vector<1x1x32xf32>
    %193 = vector.broadcast %192 : vector<1x1x32xf32> to vector<2x16x32xf32>
    %194 = arith.mulf %191, %193 : vector<2x16x32xf32>
    %195 = vector.shape_cast %10 : vector<1x32xf32> to vector<1x1x32xf32>
    %196 = vector.broadcast %195 : vector<1x1x32xf32> to vector<2x16x32xf32>
    %197 = arith.addf %194, %196 : vector<2x16x32xf32>
    %198 = vector.shape_cast %197 : vector<2x16x32xf32> to vector<32x32xf32>
    %199 = arith.truncf %198 : vector<32x32xf32> to vector<32x32xbf16>
    %c0_52 = arith.constant 0 : index
    %c0_53 = arith.constant 0 : index
    %c0_54 = arith.constant 0 : index
    %200 = vector.load %arg9[%c0_52, %c0_53, %c0_54] : memref<1x32x128xbf16, #tpu.memory_space<vmem>>, vector<1x32x128xbf16>
    %201 = vector.shape_cast %200 : vector<1x32x128xbf16> to vector<32x128xbf16>
    %cst_55 = arith.constant dense<0.000000e+00> : vector<32x128xf32>
    %202 = tpu.matmul %199, %201, %cst_55 {dimension_numbers = #tpu.dot_dimension_numbers<[1], [0], [0], [1], [0, 0, 1, 1], [], []>} : vector<32x32xbf16>, vector<32x128xbf16>, vector<32x128xf32> -> vector<32x128xf32>
    %c0_56 = arith.constant 0 : index
    %c0_57 = arith.constant 0 : index
    %c0_58 = arith.constant 0 : index
    %203 = vector.load %arg10[%c0_56, %c0_57, %c0_58] : memref<1x1x128xf32, #tpu.memory_space<vmem>>, vector<1x1x128xf32>
    %204 = vector.shape_cast %203 : vector<1x1x128xf32> to vector<1x128xf32>
    %205 = vector.broadcast %204 : vector<1x128xf32> to vector<32x128xf32>
    %206 = arith.addf %202, %205 : vector<32x128xf32>
    %cst_59 = arith.constant 1.702000e+00 : f32
    %207 = vector.broadcast %cst_59 : f32 to vector<32x128xf32>
    %208 = arith.mulf %207, %206 : vector<32x128xf32>
    %209 = arith.negf %208 : vector<32x128xf32>
    %210 = math.exp %209 : vector<32x128xf32>
    %cst_60 = arith.constant 1.000000e+00 : f32
    %211 = vector.broadcast %cst_60 : f32 to vector<32x128xf32>
    %212 = arith.addf %211, %210 : vector<32x128xf32>
    %213 = arith.divf %211, %212 : vector<32x128xf32>
    %214 = arith.mulf %206, %213 : vector<32x128xf32>
    %215 = arith.truncf %214 : vector<32x128xf32> to vector<32x128xbf16>
    %c0_61 = arith.constant 0 : index
    %c0_62 = arith.constant 0 : index
    %c0_63 = arith.constant 0 : index
    %216 = vector.load %arg11[%c0_61, %c0_62, %c0_63] : memref<1x128x32xbf16, #tpu.memory_space<vmem>>, vector<1x128x32xbf16>
    %217 = vector.shape_cast %216 : vector<1x128x32xbf16> to vector<128x32xbf16>
    %cst_64 = arith.constant dense<0.000000e+00> : vector<32x32xf32>
    %218 = tpu.matmul %215, %217, %cst_64 {dimension_numbers = #tpu.dot_dimension_numbers<[1], [0], [0], [1], [0, 0, 1, 1], [], []>} : vector<32x128xbf16>, vector<128x32xbf16>, vector<32x32xf32> -> vector<32x32xf32>
    %219 = vector.broadcast %11 : vector<1x32xf32> to vector<32x32xf32>
    %220 = arith.addf %218, %219 : vector<32x32xf32>
    %221 = vector.shape_cast %220 : vector<32x32xf32> to vector<2x16x32xf32>
    %222 = arith.addf %173, %221 : vector<2x16x32xf32>
    %c0_65 = arith.constant 0 : index
    %c0_66 = arith.constant 0 : index
    %c0_67 = arith.constant 0 : index
    %223 = vector.load %arg12[%c0_65, %c0_66, %c0_67] : memref<2x16x32xf32, #tpu.memory_space<vmem>>, vector<2x16x32xf32>
    tpu.vector_store %arg12[%c0_65, %c0_66, %c0_67], %222 {strides = array<i32>} : memref<2x16x32xf32, #tpu.memory_space<vmem>>, vector<2x16x32xf32>,
    return
  }
  func.func @transform_0(%arg0: i32, %arg1: i32) -> (i32, i32, i32) {
    %c0_i32 = arith.constant 0 : i32
    %c0_i32_0 = arith.constant 0 : i32
    %c0_i32_1 = arith.constant 0 : i32
    return %arg0, %c0_i32, %c0_i32_0 : i32, i32, i32
  }
  func.func @transform_1(%arg0: i32, %arg1: i32) -> (i32, i32, i32) {
    %c0_i32 = arith.constant 0 : i32
    %c0_i32_0 = arith.constant 0 : i32
    %c0_i32_1 = arith.constant 0 : i32
    return %arg0, %c0_i32, %c0_i32_0 : i32, i32, i32
  }
  func.func @transform_2(%arg0: i32, %arg1: i32) -> (i32, i32) {
    %c0_i32 = arith.constant 0 : i32
    %c0_i32_0 = arith.constant 0 : i32
    %c0_i32_1 = arith.constant 0 : i32
    return %c0_i32, %c0_i32_0 : i32, i32
  }
  func.func @transform_3(%arg0: i32, %arg1: i32) -> (i32, i32, i32) {
    %c0_i32 = arith.constant 0 : i32
    %c0_i32_0 = arith.constant 0 : i32
    %c0_i32_1 = arith.constant 0 : i32
    return %arg1, %c0_i32, %c0_i32_0 : i32, i32, i32
  }
  func.func @transform_4(%arg0: i32, %arg1: i32) -> (i32, i32, i32) {
    %c0_i32 = arith.constant 0 : i32
    %c0_i32_0 = arith.constant 0 : i32
    %c0_i32_1 = arith.constant 0 : i32
    return %arg1, %c0_i32, %c0_i32_0 : i32, i32, i32
  }
  func.func @transform_5(%arg0: i32, %arg1: i32) -> (i32, i32, i32) {
    %c0_i32 = arith.constant 0 : i32
    %c0_i32_0 = arith.constant 0 : i32
    %c0_i32_1 = arith.constant 0 : i32
    return %arg1, %c0_i32, %c0_i32_0 : i32, i32, i32
  }
  func.func @transform_6(%arg0: i32, %arg1: i32) -> (i32, i32, i32, i32) {
    %c0_i32 = arith.constant 0 : i32
    %c0_i32_0 = arith.constant 0 : i32
    %c0_i32_1 = arith.constant 0 : i32
    %c0_i32_2 = arith.constant 0 : i32
    return %arg1, %c0_i32, %c0_i32_0, %c0_i32_1 : i32, i32, i32, i32
  }
  func.func @transform_7(%arg0: i32, %arg1: i32) -> (i32, i32, i32) {
    %c0_i32 = arith.constant 0 : i32
    %c0_i32_0 = arith.constant 0 : i32
    %c0_i32_1 = arith.constant 0 : i32
    return %arg1, %c0_i32, %c0_i32_0 : i32, i32, i32
  }
  func.func @transform_8(%arg0: i32, %arg1: i32) -> (i32, i32, i32) {
    %c0_i32 = arith.constant 0 : i32
    %c0_i32_0 = arith.constant 0 : i32
    %c0_i32_1 = arith.constant 0 : i32
    return %arg1, %c0_i32, %c0_i32_0 : i32, i32, i32
  }
  func.func @transform_9(%arg0: i32, %arg1: i32) -> (i32, i32, i32) {
    %c0_i32 = arith.constant 0 : i32
    %c0_i32_0 = arith.constant 0 : i32
    %c0_i32_1 = arith.constant 0 : i32
    return %arg1, %c0_i32, %c0_i32_0 : i32, i32, i32
  }
  func.func @transform_10(%arg0: i32, %arg1: i32) -> (i32, i32, i32) {
    %c0_i32 = arith.constant 0 : i32
    %c0_i32_0 = arith.constant 0 : i32
    %c0_i32_1 = arith.constant 0 : i32
    return %arg0, %c0_i32, %c0_i32_0 : i32, i32, i32
  }
}

</mosaic_0001>

<llo_original>
// kernel: tpu_custom_call.1
$region0: #{tpu_custom_call.1}
  #allocation0 [shape = 'u32[]', space=smem, size = 0x4, offset = 0x4, fixed_abs, tag = 'smem constant byte address 0x4 - core index']
  #allocation1 [shape = 'u32[144,128]{1,0:T(1,128)}', space=vmem, size = 0x12000, scoped, tag = 'internal scratch']
  %s0 = inlined_call_operand.vmem [shape: f32[2,16,32], index: 0, kind: input, shape index: {}]
  %s1 = inlined_call_operand.hbm [shape: f32[2,1,16], index: 1, kind: input, shape index: {}]
  %s2 = inlined_call_operand.vmem [shape: f32[16,16], index: 2, kind: input, shape index: {}]
  %s3 = inlined_call_operand.vmem [shape: f32[2,8,32], index: 3, kind: input, shape index: {}]
  %s4 = inlined_call_operand.vmem [shape: bf16[2,32,96], index: 4, kind: input, shape index: {}]
  %s5 = inlined_call_operand.vmem [shape: f32[2,1,96], index: 5, kind: input, shape index: {}]
  %s6 = inlined_call_operand.vmem [shape: bf16[2,4,8,32], index: 6, kind: input, shape index: {}]
  %s7 = inlined_call_operand.vmem [shape: bf16[2,32,128], index: 7, kind: input, shape index: {}]
  %s8 = inlined_call_operand.vmem [shape: f32[2,1,128], index: 8, kind: input, shape index: {}]
  %s9 = inlined_call_operand.vmem [shape: bf16[2,128,32], index: 9, kind: input, shape index: {}]
  %s10 = inlined_call_operand.hbm [shape: f32[2,16,32], index: 10, kind: output, shape index: {}]
  %s11 = sld [smem:[#allocation0]]
  $region81: #{tpu_custom_call.1} parent=0
    _
  %s13 = ssub.s32 1, %s11
  %s14 = scalar_select 0, %s13, %s11
  $region1: #{tpu_custom_call.1} parent=0
    #allocation2 [shape = 'u8[1024]{0}', space=vmem, size = 0x400, scoped, tag = 'input window, operand 1, single buffered']
    #allocation3 [shape = 's32[2]{0}', space=sflag, size = 0x8, scoped, tag = 'scoped memory for tpu_custom_call.1']
    #allocation4 [shape = 's32[2]{0}', space=sflag, size = 0x8, scoped, tag = 'scoped memory for tpu_custom_call.1']
    #allocation5 [shape = 'u8[16384]{0}', space=vmem, size = 0x4000, scoped, tag = 'output window, operand 0, single buffered']
    %15 = vsyncpa [#allocation3], 0
    %16 = vsyncpa [#allocation4], 0
    loop: start=0, step=1, limit=4
    $region2: #{tpu_custom_call.1} parent=1 // loop_pre_header
      _
    $region3: #{tpu_custom_call.1} parent=1 // loop_header
      %s18 = sphi 0, %s22
      %p19 = scmp.ge.s32.totalorder %s18, 4
      %s25 = sphi 0, %s37
      %s26 = sphi 0, %s33
      %s27 = sphi 0, %s25
      %s28 = sphi 0, %s26
      %s29 = sphi 0, %s27
      %s30 = sphi 0, %s28
      %s40 = sphi 0, %s42
      %s43 = sphi 0, %s40
      %s44 = sphi 0, %s43
      %s60 = sphi 0, %s44
      %s66 = sphi 0, %s68
      %s69 = sphi 0, %s66
      %s70 = sphi 0, %s69
      %s86 = sphi 0, %s70
      %s90 = sphi 0, %s90
      %s92 = sphi 0, %s90
      %s93 = sphi 0, %s92
      %s107 = sphi 0, %s93
      %s113 = sphi 0, %s115
      %s116 = sphi 0, %s113
      %s117 = sphi 0, %s116
      %s133 = sphi 0, %s117
      %s139 = sphi 0, %s141
      %s142 = sphi 0, %s139
      %s143 = sphi 0, %s142
      %s159 = sphi 0, %s143
      %s165 = sphi 0, %s167
      %s168 = sphi 0, %s165
      %s169 = sphi 0, %s168
      %s185 = sphi 0, %s169
      %s191 = sphi 0, %s193
      %s194 = sphi 0, %s191
      %s195 = sphi 0, %s194
      %s211 = sphi 0, %s195
      %s217 = sphi 0, %s219
      %s220 = sphi 0, %s217
      %s221 = sphi 0, %s220
      %s237 = sphi 0, %s221
      %s243 = sphi 0, %s245
      %s246 = sphi 0, %s243
      %s247 = sphi 0, %s246
      %s263 = sphi 0, %s247
      %s269 = sphi 0, %s271
      %s272 = sphi 0, %s269
      %s273 = sphi 0, %s272
      %s289 = sphi 0, %s273
      %s295 = sphi 0, %s297
      %s298 = sphi 0, %s295
      %s299 = sphi 0, %s298
      %s315 = sphi 0, %s299
    $region4: #{tpu_custom_call.1} parent=1 // loop_header_branch
      %21 = sbr.rel (%p19) target = $region8
    $region5: #{tpu_custom_call.1} parent=1 // loop_body
      %s23 = ssub.s32 %s18, 1
      %s24 = ssub.s32 %s18, 2
      %s31 = sadd.s32 1, %s26
      %p32 = scmp.ge.s32.totalorder %s31, 2
      %s33 = scalar_select %p32, 0, %s31
      %s34 = sadd.s32 1, %s25
      %s35 = scalar_select %p32, %s34, %s25
      %p36 = scmp.ge.s32.totalorder %s35, 1
      %s37 = scalar_select %p36, 0, %s35
      %s38 = ssub.s32 %s25, %s37
      %p39 = scmp.eq.s32.totalorder %s38, 0
      %s41 = sadd.s32 %s40, 1
      %s42 = scalar_select %p39, %s40, %s41
      %p45 = pneg %p39
      %p46 = scmp.eq.s32.totalorder %s18, 1
      %p47 = por %p45, %p46
      %p48 = scmp.ne.s32.totalorder %s40, %s43
      %p49 = scmp.eq.s32.totalorder %s18, 0
      %p50 = por %p48, %p49
      %p51 = scmp.ne.s32.totalorder %s40, %s43
      %p52 = scmp.eq.s32.totalorder %s23, 1
      %p53 = por %p51, %p52
      %p54 = scmp.ne.s32.totalorder %s43, %s44
      %p55 = scmp.eq.s32.totalorder %s23, 0
      %p56 = por %p54, %p55
      %p57 = scmp.ne.s32.totalorder %s43, %s44
      %p58 = scmp.eq.s32.totalorder %s24, 1
      %p59 = por %p57, %p58
      %p61 = scmp.ne.s32.totalorder %s44, %s60
      %p62 = scmp.eq.s32.totalorder %s24, 0
      %p63 = por %p61, %p62
      %s64 = ssub.s32 %s25, %s37
      %p65 = scmp.eq.s32.totalorder %s64, 0
      %s67 = sadd.s32 %s66, 1
      %s68 = scalar_select %p65, %s66, %s67
      %p71 = pneg %p65
      %p72 = scmp.eq.s32.totalorder %s18, 1
      %p73 = por %p71, %p72
      %p74 = scmp.ne.s32.totalorder %s66, %s69
      %p75 = scmp.eq.s32.totalorder %s18, 0
      %p76 = por %p74, %p75
      %p77 = scmp.ne.s32.totalorder %s66, %s69
      %p78 = scmp.eq.s32.totalorder %s23, 1
      %p79 = por %p77, %p78
      %p80 = scmp.ne.s32.totalorder %s69, %s70
      %p81 = scmp.eq.s32.totalorder %s23, 0
      %p82 = por %p80, %p81
      %p83 = scmp.ne.s32.totalorder %s69, %s70
      %p84 = scmp.eq.s32.totalorder %s24, 1
      %p85 = por %p83, %p84
      %p87 = scmp.ne.s32.totalorder %s70, %s86
      %p88 = scmp.eq.s32.totalorder %s24, 0
      %p89 = por %p87, %p88
      %s91 = sadd.s32 %s90, 1
      %p94 = scmp.eq.s32.totalorder %s18, 1
      %p95 = scmp.ne.s32.totalorder %s90, %s92
      %p96 = scmp.eq.s32.totalorder %s18, 0
      %p97 = por %p95, %p96
      %p98 = scmp.ne.s32.totalorder %s90, %s92
      %p99 = scmp.eq.s32.totalorder %s23, 1
      %p100 = por %p98, %p99
      %p101 = scmp.ne.s32.totalorder %s92, %s93
      %p102 = scmp.eq.s32.totalorder %s23, 0
      %p103 = por %p101, %p102
      %p104 = scmp.ne.s32.totalorder %s92, %s93
      %p105 = scmp.eq.s32.totalorder %s24, 1
      %p106 = por %p104, %p105
      %p108 = scmp.ne.s32.totalorder %s93, %s107
      %p109 = scmp.eq.s32.totalorder %s24, 0
      %p110 = por %p108, %p109
      %s111 = ssub.s32 %s26, %s33
      %p112 = scmp.eq.s32.totalorder %s111, 0
      %s114 = sadd.s32 %s113, 1
      %s115 = scalar_select %p112, %s113, %s114
      %p118 = pneg %p112
      %p119 = scmp.eq.s32.totalorder %s18, 1
      %p120 = por %p118, %p119
      %p121 = scmp.ne.s32.totalorder %s113, %s116
      %p122 = scmp.eq.s32.totalorder %s18, 0
      %p123 = por %p121, %p122
      %p124 = scmp.ne.s32.totalorder %s113, %s116
      %p125 = scmp.eq.s32.totalorder %s23, 1
      %p126 = por %p124, %p125
      %p127 = scmp.ne.s32.totalorder %s116, %s117
      %p128 = scmp.eq.s32.totalorder %s23, 0
      %p129 = por %p127, %p128
      %p130 = scmp.ne.s32.totalorder %s116, %s117
      %p131 = scmp.eq.s32.totalorder %s24, 1
      %p132 = por %p130, %p131
      %p134 = scmp.ne.s32.totalorder %s117, %s133
      %p135 = scmp.eq.s32.totalorder %s24, 0
      %p136 = por %p134, %p135
      %s137 = ssub.s32 %s26, %s33
      %p138 = scmp.eq.s32.totalorder %s137, 0
      %s140 = sadd.s32 %s139, 1
      %s141 = scalar_select %p138, %s139, %s140
      %p144 = pneg %p138
      %p145 = scmp.eq.s32.totalorder %s18, 1
      %p146 = por %p144, %p145
      %p147 = scmp.ne.s32.totalorder %s139, %s142
      %p148 = scmp.eq.s32.totalorder %s18, 0
      %p149 = por %p147, %p148
      %p150 = scmp.ne.s32.totalorder %s139, %s142
      %p151 = scmp.eq.s32.totalorder %s23, 1
      %p152 = por %p150, %p151
      %p153 = scmp.ne.s32.totalorder %s142, %s143
      %p154 = scmp.eq.s32.totalorder %s23, 0
      %p155 = por %p153, %p154
      %p156 = scmp.ne.s32.totalorder %s142, %s143
      %p157 = scmp.eq.s32.totalorder %s24, 1
      %p158 = por %p156, %p157
      %p160 = scmp.ne.s32.totalorder %s143, %s159
      %p161 = scmp.eq.s32.totalorder %s24, 0
      %p162 = por %p160, %p161
      %s163 = ssub.s32 %s26, %s33
      %p164 = scmp.eq.s32.totalorder %s163, 0
      %s166 = sadd.s32 %s165, 1
      %s167 = scalar_select %p164, %s165, %s166
      %p170 = pneg %p164
      %p171 = scmp.eq.s32.totalorder %s18, 1
      %p172 = por %p170, %p171
      %p173 = scmp.ne.s32.totalorder %s165, %s168
      %p174 = scmp.eq.s32.totalorder %s18, 0
      %p175 = por %p173, %p174
      %p176 = scmp.ne.s32.totalorder %s165, %s168
      %p177 = scmp.eq.s32.totalorder %s23, 1
      %p178 = por %p176, %p177
      %p179 = scmp.ne.s32.totalorder %s168, %s169
      %p180 = scmp.eq.s32.totalorder %s23, 0
      %p181 = por %p179, %p180
      %p182 = scmp.ne.s32.totalorder %s168, %s169
      %p183 = scmp.eq.s32.totalorder %s24, 1
      %p184 = por %p182, %p183
      %p186 = scmp.ne.s32.totalorder %s169, %s185
      %p187 = scmp.eq.s32.totalorder %s24, 0
      %p188 = por %p186, %p187
      %s189 = ssub.s32 %s26, %s33
      %p190 = scmp.eq.s32.totalorder %s189, 0
      %s192 = sadd.s32 %s191, 1
      %s193 = scalar_select %p190, %s191, %s192
      %p196 = pneg %p190
      %p197 = scmp.eq.s32.totalorder %s18, 1
      %p198 = por %p196, %p197
      %p199 = scmp.ne.s32.totalorder %s191, %s194
      %p200 = scmp.eq.s32.totalorder %s18, 0
      %p201 = por %p199, %p200
      %p202 = scmp.ne.s32.totalorder %s191, %s194
      %p203 = scmp.eq.s32.totalorder %s23, 1
      %p204 = por %p202, %p203
      %p205 = scmp.ne.s32.totalorder %s194, %s195
      %p206 = scmp.eq.s32.totalorder %s23, 0
      %p207 = por %p205, %p206
      %p208 = scmp.ne.s32.totalorder %s194, %s195
      %p209 = scmp.eq.s32.totalorder %s24, 1
      %p210 = por %p208, %p209
      %p212 = scmp.ne.s32.totalorder %s195, %s211
      %p213 = scmp.eq.s32.totalorder %s24, 0
      %p214 = por %p212, %p213
      %s215 = ssub.s32 %s26, %s33
      %p216 = scmp.eq.s32.totalorder %s215, 0
      %s218 = sadd.s32 %s217, 1
      %s219 = scalar_select %p216, %s217, %s218
      %p222 = pneg %p216
      %p223 = scmp.eq.s32.totalorder %s18, 1
      %p224 = por %p222, %p223
      %p225 = scmp.ne.s32.totalorder %s217, %s220
      %p226 = scmp.eq.s32.totalorder %s18, 0
      %p227 = por %p225, %p226
      %p228 = scmp.ne.s32.totalorder %s217, %s220
      %p229 = scmp.eq.s32.totalorder %s23, 1
      %p230 = por %p228, %p229
      %p231 = scmp.ne.s32.totalorder %s220, %s221
      %p232 = scmp.eq.s32.totalorder %s23, 0
      %p233 = por %p231, %p232
      %p234 = scmp.ne.s32.totalorder %s220, %s221
      %p235 = scmp.eq.s32.totalorder %s24, 1
      %p236 = por %p234, %p235
      %p238 = scmp.ne.s32.totalorder %s221, %s237
      %p239 = scmp.eq.s32.totalorder %s24, 0
      %p240 = por %p238, %p239
      %s241 = ssub.s32 %s26, %s33
      %p242 = scmp.eq.s32.totalorder %s241, 0
      %s244 = sadd.s32 %s243, 1
      %s245 = scalar_select %p242, %s243, %s244
      %p248 = pneg %p242
      %p249 = scmp.eq.s32.totalorder %s18, 1
      %p250 = por %p248, %p249
      %p251 = scmp.ne.s32.totalorder %s243, %s246
      %p252 = scmp.eq.s32.totalorder %s18, 0
      %p253 = por %p251, %p252
      %p254 = scmp.ne.s32.totalorder %s243, %s246
      %p255 = scmp.eq.s32.totalorder %s23, 1
      %p256 = por %p254, %p255
      %p257 = scmp.ne.s32.totalorder %s246, %s247
      %p258 = scmp.eq.s32.totalorder %s23, 0
      %p259 = por %p257, %p258
      %p260 = scmp.ne.s32.totalorder %s246, %s247
      %p261 = scmp.eq.s32.totalorder %s24, 1
      %p262 = por %p260, %p261
      %p264 = scmp.ne.s32.totalorder %s247, %s263
      %p265 = scmp.eq.s32.totalorder %s24, 0
      %p266 = por %p264, %p265
      %s267 = ssub.s32 %s26, %s33
      %p268 = scmp.eq.s32.totalorder %s267, 0
      %s270 = sadd.s32 %s269, 1
      %s271 = scalar_select %p268, %s269, %s270
      %p274 = pneg %p268
      %p275 = scmp.eq.s32.totalorder %s18, 1
      %p276 = por %p274, %p275
      %p277 = scmp.ne.s32.totalorder %s269, %s272
      %p278 = scmp.eq.s32.totalorder %s18, 0
      %p279 = por %p277, %p278
      %p280 = scmp.ne.s32.totalorder %s269, %s272
      %p281 = scmp.eq.s32.totalorder %s23, 1
      %p282 = por %p280, %p281
      %p283 = scmp.ne.s32.totalorder %s272, %s273
      %p284 = scmp.eq.s32.totalorder %s23, 0
      %p285 = por %p283, %p284
      %p286 = scmp.ne.s32.totalorder %s272, %s273
      %p287 = scmp.eq.s32.totalorder %s24, 1
      %p288 = por %p286, %p287
      %p290 = scmp.ne.s32.totalorder %s273, %s289
      %p291 = scmp.eq.s32.totalorder %s24, 0
      %p292 = por %p290, %p291
      %s293 = ssub.s32 %s25, %s37
      %p294 = scmp.eq.s32.totalorder %s293, 0
      %s296 = sadd.s32 %s295, 1
      %s297 = scalar_select %p294, %s295, %s296
      %p300 = pneg %p294
      %p301 = scmp.eq.s32.totalorder %s18, 1
      %p302 = por %p300, %p301
      %p303 = scmp.ne.s32.totalorder %s295, %s298
      %p304 = scmp.eq.s32.totalorder %s18, 0
      %p305 = por %p303, %p304
      %p306 = scmp.ne.s32.totalorder %s295, %s298
      %p307 = scmp.eq.s32.totalorder %s23, 1
      %p308 = por %p306, %p307
      %p309 = scmp.ne.s32.totalorder %s298, %s299
      %p310 = scmp.eq.s32.totalorder %s23, 0
      %p311 = por %p309, %p310
      %p312 = scmp.ne.s32.totalorder %s298, %s299
      %p313 = scmp.eq.s32.totalorder %s24, 1
      %p314 = por %p312, %p313
      %p316 = scmp.ne.s32.totalorder %s299, %s315
      %p317 = scmp.eq.s32.totalorder %s24, 0
      %p318 = por %p316, %p317
      %p319 = scmp.le.s32.totalorder 1, %s18
      %p320 = scmp.lt.s32.totalorder %s18, 3
      %p321 = pnand %p319, %p320
      %p322 = pneg %p321
      // Predicated region
      $region9: #{tpu_custom_call.1} parent=5 // pred_check
        _
      $region10: #{tpu_custom_call.1} parent=5 // pred_check_branch
        %324 = sbr.rel (%p321) target = $region12
      $region11: #{tpu_custom_call.1} parent=5 // pred_region
        %s325 = ssub.s32 %s18, 1
        // Predicated region
        $region13: #{tpu_custom_call.1} parent=11 // pred_check
          %p326 = pneg %p56
        $region14: #{tpu_custom_call.1} parent=11 // pred_check_branch
          %328 = sbr.rel (%p326) target = $region16
        $region15: #{tpu_custom_call.1} parent=11 // pred_region
          %s329 = smul.u32 2, %s27
          %p330 = scmp.lt.s32.totalorder %s329, 1
          %s331 = scalar_select %p330, %s329, 1
          %s332 = smul.addr %s331, 2
          %s333 = smul.addr %s332, 8
          %s334 = scalar_lea.vmem %s0, %s333
          %s335 = smul.u32 2, %s27
        $region16: #{tpu_custom_call.1} parent=11 // pred_fallthru
          _
        // Predicated region
        $region17: #{tpu_custom_call.1} parent=11 // pred_check
          %p336 = pneg %p82
        $region18: #{tpu_custom_call.1} parent=11 // pred_check_branch
          %338 = sbr.rel (%p336) target = $region20
        $region19: #{tpu_custom_call.1} parent=11 // pred_region
          %s339 = smul.u32 2, %s27
          %s341 = ssub.s32 32, 32
          %342 = vsyncadd [#allocation3], %s341
          %s343 = smul.addr %s339, 16
          %s344 = scalar_lea.hbm %s1, %s343
          %s345 = sshll.u32 [#allocation2], 4
          %s346 = int_to_ptr.vmem [resolvable:$true] %s345
          %351 = dma.hbm_to_vmem [thread:$0]  %s344, 32, %s346, [#allocation3], 16, 16, 1
        $region20: #{tpu_custom_call.1} parent=11 // pred_fallthru
          _
        // Predicated region
        $region21: #{tpu_custom_call.1} parent=11 // pred_check
          %p352 = pneg %p103
        $region22: #{tpu_custom_call.1} parent=11 // pred_check_branch
          %354 = sbr.rel (%p352) target = $region24
        $region23: #{tpu_custom_call.1} parent=11 // pred_region
          _
        $region24: #{tpu_custom_call.1} parent=11 // pred_fallthru
          _
      $region12: #{tpu_custom_call.1} parent=5 // pred_fallthru
        _
      %p355 = scmp.lt.s32.totalorder %s18, 2
      // Predicated region
      $region25: #{tpu_custom_call.1} parent=5 // pred_check
        %p356 = pneg %p355
      $region26: #{tpu_custom_call.1} parent=5 // pred_check_branch
        %358 = sbr.rel (%p356) target = $region28
      $region27: #{tpu_custom_call.1} parent=5 // pred_region
        // Predicated region
        $region29: #{tpu_custom_call.1} parent=27 // pred_check
          %p359 = pneg %p123
        $region30: #{tpu_custom_call.1} parent=27 // pred_check_branch
          %361 = sbr.rel (%p359) target = $region32
        $region31: #{tpu_custom_call.1} parent=27 // pred_region
          %p362 = scmp.lt.s32.totalorder %s26, 1
          %s363 = scalar_select %p362, %s26, 1
          %s364 = smul.addr %s363, 8
          %s365 = scalar_lea.vmem %s3, %s364
        $region32: #{tpu_custom_call.1} parent=27 // pred_fallthru
          _
        // Predicated region
        $region33: #{tpu_custom_call.1} parent=27 // pred_check
          %p366 = pneg %p149
        $region34: #{tpu_custom_call.1} parent=27 // pred_check_branch
          %368 = sbr.rel (%p366) target = $region36
        $region35: #{tpu_custom_call.1} parent=27 // pred_region
          %p369 = scmp.lt.s32.totalorder %s26, 1
          %s370 = scalar_select %p369, %s26, 1
          %s371 = smul.addr %s370, 4
          %s372 = smul.addr %s371, 4
          %s373 = scalar_lea.vmem %s4, %s372
        $region36: #{tpu_custom_call.1} parent=27 // pred_fallthru
          _
        // Predicated region
        $region37: #{tpu_custom_call.1} parent=27 // pred_check
          %p374 = pneg %p175
        $region38: #{tpu_custom_call.1} parent=27 // pred_check_branch
          %376 = sbr.rel (%p374) target = $region40
        $region39: #{tpu_custom_call.1} parent=27 // pred_region
          %p377 = scmp.lt.s32.totalorder %s26, 1
          %s378 = scalar_select %p377, %s26, 1
          %s379 = scalar_lea.vmem %s5, %s378
        $region40: #{tpu_custom_call.1} parent=27 // pred_fallthru
          _
        // Predicated region
        $region41: #{tpu_custom_call.1} parent=27 // pred_check
          %p380 = pneg %p201
        $region42: #{tpu_custom_call.1} parent=27 // pred_check_branch
          %382 = sbr.rel (%p380) target = $region44
        $region43: #{tpu_custom_call.1} parent=27 // pred_region
          %p383 = scmp.lt.s32.totalorder %s26, 1
          %s384 = scalar_select %p383, %s26, 1
          %s385 = smul.addr %s384, 4
          %s386 = smul.addr %s385, 4
          %s387 = scalar_lea.vmem %s6, %s386
        $region44: #{tpu_custom_call.1} parent=27 // pred_fallthru
          _
        // Predicated region
        $region45: #{tpu_custom_call.1} parent=27 // pred_check
          %p388 = pneg %p227
        $region46: #{tpu_custom_call.1} parent=27 // pred_check_branch
          %390 = sbr.rel (%p388) target = $region48
        $region47: #{tpu_custom_call.1} parent=27 // pred_region
          %p391 = scmp.lt.s32.totalorder %s26, 1
          %s392 = scalar_select %p391, %s26, 1
          %s393 = smul.addr %s392, 4
          %s394 = smul.addr %s393, 4
          %s395 = scalar_lea.vmem %s7, %s394
        $region48: #{tpu_custom_call.1} parent=27 // pred_fallthru
          _
        // Predicated region
        $region49: #{tpu_custom_call.1} parent=27 // pred_check
          %p396 = pneg %p253
        $region50: #{tpu_custom_call.1} parent=27 // pred_check_branch
          %398 = sbr.rel (%p396) target = $region52
        $region51: #{tpu_custom_call.1} parent=27 // pred_region
          %p399 = scmp.lt.s32.totalorder %s26, 1
          %s400 = scalar_select %p399, %s26, 1
          %s401 = scalar_lea.vmem %s8, %s400
        $region52: #{tpu_custom_call.1} parent=27 // pred_fallthru
          _
        // Predicated region
        $region53: #{tpu_custom_call.1} parent=27 // pred_check
          %p402 = pneg %p279
        $region54: #{tpu_custom_call.1} parent=27 // pred_check_branch
          %404 = sbr.rel (%p402) target = $region56
        $region55: #{tpu_custom_call.1} parent=27 // pred_region
          %p405 = scmp.lt.s32.totalorder %s26, 1
          %s406 = scalar_select %p405, %s26, 1
          %s407 = smul.addr %s406, 16
          %s408 = smul.addr %s407, 4
          %s409 = scalar_lea.vmem %s9, %s408
        $region56: #{tpu_custom_call.1} parent=27 // pred_fallthru
          _
      $region28: #{tpu_custom_call.1} parent=5 // pred_fallthru
        _
      %p410 = scmp.le.s32.totalorder 1, %s18
      %p411 = scmp.lt.s32.totalorder %s18, 3
      %p412 = pnand %p410, %p411
      %p413 = pneg %p412
      // Predicated region
      $region57: #{tpu_custom_call.1} parent=5 // pred_check
        _
      $region58: #{tpu_custom_call.1} parent=5 // pred_check_branch
        %415 = sbr.rel (%p412) target = $region60
      $region59: #{tpu_custom_call.1} parent=5 // pred_region
        %s416 = ssub.s32 %s18, 1
        // Predicated region
        $region61: #{tpu_custom_call.1} parent=59 // pred_check
          %p417 = pneg %p82
        $region62: #{tpu_custom_call.1} parent=59 // pred_check_branch
          %419 = sbr.rel (%p417) target = $region64
        $region63: #{tpu_custom_call.1} parent=59 // pred_region
          %420 = dma.done [#allocation3], 32
        $region64: #{tpu_custom_call.1} parent=59 // pred_fallthru
          _
        %s421 = smul.u32 2, %s27
        %p422 = scmp.lt.s32.totalorder %s421, 1
        %s423 = scalar_select %p422, %s421, 1
        %s424 = smul.addr %s423, 2
        %s425 = smul.addr %s424, 8
        %s426 = scalar_lea.vmem %s0, %s425
        %p427 = pneg %p56
        %p428 = pneg %p53
        %p429 = pneg %p82
        %p430 = pneg %p79
        %p431 = pneg %p103
        %p432 = pneg %p100
        %p433 = scmp.lt.s32.totalorder %s28, 1
        %s434 = scalar_select %p433, %s28, 1
        %s435 = smul.addr %s434, 8
        %s436 = scalar_lea.vmem %s3, %s435
        %p437 = pneg %p129
        %p438 = pneg %p126
        %p439 = scmp.lt.s32.totalorder %s28, 1
        %s440 = scalar_select %p439, %s28, 1
        %s441 = smul.addr %s440, 4
        %s442 = smul.addr %s441, 4
        %s443 = scalar_lea.vmem %s4, %s442
        %p444 = pneg %p155
        %p445 = pneg %p152
        %p446 = scmp.lt.s32.totalorder %s28, 1
        %s447 = scalar_select %p446, %s28, 1
        %s448 = scalar_lea.vmem %s5, %s447
        %p449 = pneg %p181
        %p450 = pneg %p178
        %p451 = scmp.lt.s32.totalorder %s28, 1
        %s452 = scalar_select %p451, %s28, 1
        %s453 = smul.addr %s452, 4
        %s454 = smul.addr %s453, 4
        %s455 = scalar_lea.vmem %s6, %s454
        %p456 = pneg %p207
        %p457 = pneg %p204
        %p458 = scmp.lt.s32.totalorder %s28, 1
        %s459 = scalar_select %p458, %s28, 1
        %s460 = smul.addr %s459, 4
        %s461 = smul.addr %s460, 4
        %s462 = scalar_lea.vmem %s7, %s461
        %p463 = pneg %p233
        %p464 = pneg %p230
        %p465 = scmp.lt.s32.totalorder %s28, 1
        %s466 = scalar_select %p465, %s28, 1
        %s467 = scalar_lea.vmem %s8, %s466
        %p468 = pneg %p259
        %p469 = pneg %p256
        %p470 = scmp.lt.s32.totalorder %s28, 1
        %s471 = scalar_select %p470, %s28, 1
        %s472 = smul.addr %s471, 16
        %s473 = smul.addr %s472, 4
        %s474 = scalar_lea.vmem %s9, %s473
        %p475 = pneg %p285
        %p476 = pneg %p282
        %p477 = pneg %p311
        %p478 = pneg %p308
        %s479 = smul.u32 2, %s27
        %p480 = scmp.lt.s32.totalorder %s479, 1
        %s481 = scalar_select %p480, %s479, 1
        %s482 = smul.addr %s481, 2
        %s483 = smul.addr %s482, 8
        %s484 = scalar_lea.vmem %s0, %s483
        %s485 = smul.u32 2, %s27
        %s486 = smul.u32 2, %s27
        %p487 = scmp.lt.s32.totalorder %s28, 1
        %s488 = scalar_select %p487, %s28, 1
        %s489 = smul.addr %s488, 8
        %s490 = scalar_lea.vmem %s3, %s489
        %p491 = scmp.lt.s32.totalorder %s28, 1
        %s492 = scalar_select %p491, %s28, 1
        %s493 = smul.addr %s492, 4
        %s494 = smul.addr %s493, 4
        %s495 = scalar_lea.vmem %s4, %s494
        %p496 = scmp.lt.s32.totalorder %s28, 1
        %s497 = scalar_select %p496, %s28, 1
        %s498 = scalar_lea.vmem %s5, %s497
        %p499 = scmp.lt.s32.totalorder %s28, 1
        %s500 = scalar_select %p499, %s28, 1
        %s501 = smul.addr %s500, 4
        %s502 = smul.addr %s501, 4
        %s503 = scalar_lea.vmem %s6, %s502
        %p504 = scmp.lt.s32.totalorder %s28, 1
        %s505 = scalar_select %p504, %s28, 1
        %s506 = smul.addr %s505, 4
        %s507 = smul.addr %s506, 4
        %s508 = scalar_lea.vmem %s7, %s507
        %p509 = scmp.lt.s32.totalorder %s28, 1
        %s510 = scalar_select %p509, %s28, 1
        %s511 = scalar_lea.vmem %s8, %s510
        %p512 = scmp.lt.s32.totalorder %s28, 1
        %s513 = scalar_select %p512, %s28, 1
        %s514 = smul.addr %s513, 16
        %s515 = smul.addr %s514, 4
        %s516 = scalar_lea.vmem %s9, %s515
        %s517 = smul.u32 2, %s27
        %p519 = scmp.eq.s32.totalorder %s28, 0
        // Predicated region
        $region65: #{tpu_custom_call.1} parent=59 // pred_check
          %p520 = pneg %p519
        $region66: #{tpu_custom_call.1} parent=59 // pred_check_branch
          %522 = sbr.rel (%p520) target = $region68
        $region67: #{tpu_custom_call.1} parent=59 // pred_region
          %v523 = vld [vmem:[%s484] sm:$0xff]
          %v524 = vld [vmem:[%s484 + $0x8] sm:$0xff]
          %v525 = vld [vmem:[%s484 + $0x10] sm:$0xff]
          %v526 = vld [vmem:[%s484 + $0x18] sm:$0xff]
          %vm527 = vcmask 261120
          %528 = vst.msk [vmem:[#allocation5] sm:$0xff] %vm527, %v523
          %529 = vst.msk [vmem:[#allocation5 + $0x8] sm:$0xff] %vm527, %v524
          %530 = vst.msk [vmem:[#allocation5 + $0x10] sm:$0xff] %vm527, %v525
          %531 = vst.msk [vmem:[#allocation5 + $0x18] sm:$0xff] %vm527, %v526
        $region68: #{tpu_custom_call.1} parent=59 // pred_fallthru
          _
        %v532 = vld [vmem:[#allocation5] sm:$0xff]
        %v533 = vld [vmem:[#allocation5 + $0x8] sm:$0xff]
        %v534 = vld [vmem:[#allocation5 + $0x10] sm:$0xff]
        %v535 = vld [vmem:[#allocation5 + $0x18] sm:$0xff]
        %v536 = vld [vmem:[%s490] sm:$0xff]
        %v537 = vld [vmem:[#allocation2] sm:$0x1]
        %v538 = vld [vmem:[#allocation2 + $0x1] sm:$0x1]
        %v539 = vld [vmem:[%s2] sm:$0xff]
        %v540 = vld [vmem:[%s2 + $0x8] sm:$0xff]
        %v543 = vlaneseq
        %v544 = vshrl.u32 %v543, 7
        %v545 = vsub.s32 0, %v544
        %v546 = vrot.slane %v537, %v545
        %v547 = vlaneseq
        %v548 = vshrl.u32 %v547, 7
        %v549 = vsub.s32 0, %v548
        %v550 = vrot.slane %v538, %v549
        %v553 = vadd.f32 %v546, %v539
        %v554 = vadd.f32 %v546, %v540
        %v555 = vadd.f32 %v550, %v539
        %v556 = vadd.f32 %v550, %v540
        %vm557 = vcmask 261120
        %v558 = vsel %vm557, %v532, 0.0
        %559 = vadd.xlane.f32.xlu0 %v558
        %v560 = vpop.xlane.xlu0 %559
        %v561 = vsel %vm557, %v533, 0.0
        %562 = vadd.xlane.f32.xlu0 %v561
        %v563 = vpop.xlane.xlu0 %562
        %v564 = vsel %vm557, %v534, 0.0
        %565 = vadd.xlane.f32.xlu0 %v564
        %v566 = vpop.xlane.xlu0 %565
        %v567 = vsel %vm557, %v535, 0.0
        %568 = vadd.xlane.f32.xlu0 %v567
        %v569 = vpop.xlane.xlu0 %568
        %v570 = vrcp.pop 32.0
        %v571 = vmul.f32 %v560, %v570
        %v572 = vmul.f32 %v563, %v570
        %v573 = vmul.f32 %v566, %v570
        %v574 = vmul.f32 %v569, %v570
        %v575 = vsub.f32 %v532, %v571
        %v576 = vsub.f32 %v533, %v572
        %v577 = vsub.f32 %v534, %v573
        %v578 = vsub.f32 %v535, %v574
        %v579 = vmul.f32 %v575, %v575
        %v580 = vmul.f32 %v576, %v576
        %v581 = vmul.f32 %v577, %v577
        %v582 = vmul.f32 %v578, %v578
        %v583 = vsel %vm557, %v579, 0.0
        %584 = vadd.xlane.f32.xlu0 %v583
        %v585 = vpop.xlane.xlu0 %584
        %v586 = vsel %vm557, %v580, 0.0
        %587 = vadd.xlane.f32.xlu0 %v586
        %v588 = vpop.xlane.xlu0 %587
        %v589 = vsel %vm557, %v581, 0.0
        %590 = vadd.xlane.f32.xlu0 %v589
        %v591 = vpop.xlane.xlu0 %590
        %v592 = vsel %vm557, %v582, 0.0
        %593 = vadd.xlane.f32.xlu0 %v592
        %v594 = vpop.xlane.xlu0 %593
        %v595 = vmul.f32 %v585, %v570
        %v596 = vmul.f32 %v588, %v570
        %v597 = vmul.f32 %v591, %v570
        %v598 = vmul.f32 %v594, %v570
        %v599 = vadd.f32 %v595, 1e-05
        %v600 = vadd.f32 %v596, 1e-05
        %v601 = vadd.f32 %v597, 1e-05
        %v602 = vadd.f32 %v598, 1e-05
        %v603 = vrsqrt.pop %v599
        %v604 = vrsqrt.pop %v600
        %v605 = vrsqrt.pop %v601
        %v606 = vrsqrt.pop %v602
        %v607 = vmul.f32 %v575, %v603
        %v608 = vmul.f32 %v576, %v604
        %v609 = vmul.f32 %v577, %v605
        %v610 = vmul.f32 %v578, %v606
        %v611 = vlaneseq
        %v612 = vshrl.u32 %v611, 7
        %v613 = vsub.s32 0, %v612
        %v614 = vrot.slane %v536, %v613
        %v615 = vmul.f32 %v607, %v614
        %v616 = vmul.f32 %v608, %v614
        %v617 = vmul.f32 %v609, %v614
        %v618 = vmul.f32 %v610, %v614
        %v619 = vlaneseq
        %v620 = vshrl.u32 %v619, 7
        %v621 = vsub.s32 1, %v620
        %v622 = vrot.slane %v536, %v621
        %v623 = vadd.f32 %v615, %v622
        %v624 = vadd.f32 %v616, %v622
        %v625 = vadd.f32 %v617, %v622
        %v626 = vadd.f32 %v618, %v622
        %v627 = vpack.c.bf16 %v624, %v623
        %v628 = vpack.c.bf16 %v626, %v625
        %v629 = vld [vmem:[%s495] sm:$0xf]
        %v630 = vld [vmem:[%s495 + $0x4] sm:$0xf]
        %v631 = vld [vmem:[%s495 + $0x8] sm:$0xf]
        %v632 = vld [vmem:[%s495 + $0xc] sm:$0xf]
        %v633 = vld [vmem:[%s498] sm:$0x1]
        %v635 = vlaneseq
        %v636 = vshrl.u32 %v635, 7
        %v637 = vsub.s32 0, %v636
        %v638 = vrot.slane %v633, %v637
        %v644 = vunpack.c.l.b16 %v629
        %v645 = vunpack.c.l.b16 %v630
        %v646 = vunpack.c.l.b16 %v631
        %v647 = vunpack.c.l.b16 %v632
        %v648 = vpack.c.b16 %v645, %v644
        %v649 = vpack.c.b16 %v647, %v646
        %v653 = vsel %vm557, %v627, 0
        %v656 = vsel %vm557, %v628, 0
        %658 = vmatprep.subr.bf16.mxu0 0
        %659 = vmatpush1.bf16.msra.mxu0 0
        %660 = vmatprep.subr.bf16.mxu0 0
        %661 = vmatpush1.bf16.msra.mxu0 0
        %662 = vmatprep.subr.bf16.mxu0 0
        %663 = vmatpush1.bf16.msra.mxu0 0
        %664 = vmatprep.subr.bf16.mxu0 0
        %665 = vmatpush1.bf16.msra.mxu0 0
        %666 = vmatprep.subr.bf16.mxu0 0
        %667 = vmatpush1.bf16.msra.mxu0 0
        %668 = vmatprep.subr.bf16.mxu0 0
        %669 = vmatpush1.bf16.msra.mxu0 0
        %670 = vmatprep.subr.bf16.mxu0 0
        %671 = vmatpush1.bf16.msra.mxu0 %v649
        %672 = vmatprep.subr.bf16.mxu0 0
        %673 = vmatpush1.bf16.msra.mxu0 %v648
        %674 = vmatprep.subr.bf16.mxu0 0
        %675 = vmatpush2.bf16.msra.mxu0 0
        %676 = vmatprep.subr.bf16.mxu0 0
        %677 = vmatpush2.bf16.msra.mxu0 0
        %678 = vmatprep.subr.bf16.mxu0 0
        %679 = vmatpush2.bf16.msra.mxu0 0
        %680 = vmatprep.subr.bf16.mxu0 0
        %681 = vmatpush2.bf16.msra.mxu0 0
        %682 = vmatprep.subr.bf16.mxu0 0
        %683 = vmatpush2.bf16.msra.mxu0 0
        %684 = vmatprep.subr.bf16.mxu0 0
        %685 = vmatpush2.bf16.msra.mxu0 0
        %686 = vmatprep.subr.bf16.mxu0 0
        %687 = vmatpush2.bf16.msra.mxu0 0
        %688 = vmatprep.subr.bf16.mxu0 0
        %689 = vmatpush2.bf16.msra.mxu0 0
        %690 = vmatprep.mubr.bf16.mxu0 0
        %691 = vmatmul.mubr.bf16.gmra.mxu0 %v653
        %v692 = vpop.f32.mrf.mxu0
        %v693 = vadd.f32 %v638, %v692
        %v694 = vpop.f32.mrf.mxu0
        %v695 = vpop.f32.mrf.mxu0
        %v696 = vadd.f32 %v638, %v695
        %v697 = vpop.f32.mrf.mxu0
        %698 = vmatprep.mubr.bf16.mxu0 0
        %699 = vmatmul.mubr.bf16.gmra.mxu0 %v656
        %v700 = vpop.f32.mrf.mxu0
        %v701 = vadd.f32 %v638, %v700
        %v702 = vpop.f32.mrf.mxu0
        %v703 = vpop.f32.mrf.mxu0
        %v704 = vadd.f32 %v638, %v703
        %v705 = vpop.f32.mrf.mxu0
        %706 = vdwg.mxu0
        %v707 = vld [vmem:[%s503] sm:$0xf]
        %v708 = vld [vmem:[%s503 + $0x4] sm:$0xf]
        %v709 = vld [vmem:[%s503 + $0x8] sm:$0xf]
        %v710 = vld [vmem:[%s503 + $0xc] sm:$0xf]
        %v711 = vpack.c.bf16 %v696, %v693
        %v712 = vpack.c.bf16 %v704, %v701
        %714 = vrot.lane.b32.xlu0 %v711, 96
        %v715 = vpop.permute.xlu0 %714
        %vm716 = vcmask 64512
        %v718 = vsel %vm716, %v711, 0
        %v721 = vsel %vm716, %v715, 0
        %723 = vmatprep.subr.bf16.mxu0 0
        %724 = vmatpush1.bf16.xpose.msra.mxu0 0
        %725 = vmatprep.subr.bf16.mxu0 0
        %726 = vmatpush1.bf16.xpose.msra.mxu0 0
        %727 = vmatprep.subr.bf16.mxu0 0
        %728 = vmatpush1.bf16.xpose.msra.mxu0 0
        %729 = vmatprep.subr.bf16.mxu0 0
        %730 = vmatpush1.bf16.xpose.msra.mxu0 0
        %731 = vmatprep.subr.bf16.mxu0 0
        %732 = vmatpush1.bf16.xpose.msra.mxu0 0
        %733 = vmatprep.subr.bf16.mxu0 0
        %734 = vmatpush1.bf16.xpose.msra.mxu0 0
        %735 = vmatprep.subr.bf16.mxu0 0
        %736 = vmatpush1.bf16.xpose.msra.mxu0 0
        %737 = vmatprep.subr.bf16.mxu0 0
        %738 = vmatpush1.bf16.xpose.msra.mxu0 %v721
        %739 = vmatprep.subr.bf16.mxu0 0
        %740 = vmatpush2.bf16.xpose.msra.mxu0 0
        %741 = vmatprep.subr.bf16.mxu0 0
        %742 = vmatpush2.bf16.xpose.msra.mxu0 0
        %743 = vmatprep.subr.bf16.mxu0 0
        %744 = vmatpush2.bf16.xpose.msra.mxu0 0
        %745 = vmatprep.subr.bf16.mxu0 0
        %746 = vmatpush2.bf16.xpose.msra.mxu0 0
        %747 = vmatprep.subr.bf16.mxu0 0
        %748 = vmatpush2.bf16.xpose.msra.mxu0 0
        %749 = vmatprep.subr.bf16.mxu0 0
        %750 = vmatpush2.bf16.xpose.msra.mxu0 0
        %751 = vmatprep.subr.bf16.mxu0 0
        %752 = vmatpush2.bf16.xpose.msra.mxu0 0
        %753 = vmatprep.subr.bf16.mxu0 0
        %754 = vmatpush2.bf16.xpose.msra.mxu0 0
        %755 = vmatprep.mubr.bf16.mxu0 0
        %756 = vmatmul.mubr.bf16.gmra.mxu0 %v718
        %v757 = vpop.f32.mrf.mxu0
        %v758 = vadd.f32 %v553, %v757
        %v759 = vpop.f32.mrf.mxu0
        %v760 = vpop.f32.mrf.mxu0
        %v761 = vadd.f32 %v554, %v760
        %v762 = vpop.f32.mrf.mxu0
        %763 = vdwg.mxu0
        %765 = vrot.lane.b32.xlu0 %v712, 96
        %v766 = vpop.permute.xlu0 %765
        %v768 = vsel %vm716, %v712, 0
        %v771 = vsel %vm716, %v766, 0
        %773 = vmatprep.subr.bf16.mxu0 0
        %774 = vmatpush1.bf16.xpose.msra.mxu0 0
        %775 = vmatprep.subr.bf16.mxu0 0
        %776 = vmatpush1.bf16.xpose.msra.mxu0 0
        %777 = vmatprep.subr.bf16.mxu0 0
        %778 = vmatpush1.bf16.xpose.msra.mxu0 0
        %779 = vmatprep.subr.bf16.mxu0 0
        %780 = vmatpush1.bf16.xpose.msra.mxu0 0
        %781 = vmatprep.subr.bf16.mxu0 0
        %782 = vmatpush1.bf16.xpose.msra.mxu0 0
        %783 = vmatprep.subr.bf16.mxu0 0
        %784 = vmatpush1.bf16.xpose.msra.mxu0 0
        %785 = vmatprep.subr.bf16.mxu0 0
        %786 = vmatpush1.bf16.xpose.msra.mxu0 0
        %787 = vmatprep.subr.bf16.mxu0 0
        %788 = vmatpush1.bf16.xpose.msra.mxu0 %v771
        %789 = vmatprep.subr.bf16.mxu0 0
        %790 = vmatpush2.bf16.xpose.msra.mxu0 0
        %791 = vmatprep.subr.bf16.mxu0 0
        %792 = vmatpush2.bf16.xpose.msra.mxu0 0
        %793 = vmatprep.subr.bf16.mxu0 0
        %794 = vmatpush2.bf16.xpose.msra.mxu0 0
        %795 = vmatprep.subr.bf16.mxu0 0
        %796 = vmatpush2.bf16.xpose.msra.mxu0 0
        %797 = vmatprep.subr.bf16.mxu0 0
        %798 = vmatpush2.bf16.xpose.msra.mxu0 0
        %799 = vmatprep.subr.bf16.mxu0 0
        %800 = vmatpush2.bf16.xpose.msra.mxu0 0
        %801 = vmatprep.subr.bf16.mxu0 0
        %802 = vmatpush2.bf16.xpose.msra.mxu0 0
        %803 = vmatprep.subr.bf16.mxu0 0
        %804 = vmatpush2.bf16.xpose.msra.mxu0 0
        %805 = vmatprep.mubr.bf16.mxu0 0
        %806 = vmatmul.mubr.bf16.gmra.mxu0 %v768
        %v807 = vpop.f32.mrf.mxu0
        %v808 = vadd.f32 %v555, %v807
        %v809 = vpop.f32.mrf.mxu0
        %v810 = vpop.f32.mrf.mxu0
        %v811 = vadd.f32 %v556, %v810
        %v812 = vpop.f32.mrf.mxu0
        %813 = vdwg.mxu0
        %vm814 = vcmask 130048
        %v815 = vsel %vm814, %v758, -inf
        %816 = vmax.xlane.f32.xlu0 %v815
        %v817 = vpop.xlane.xlu0 %816
        %v818 = vsel %vm814, %v761, -inf
        %819 = vmax.xlane.f32.xlu0 %v818
        %v820 = vpop.xlane.xlu0 %819
        %v821 = vsel %vm814, %v808, -inf
        %822 = vmax.xlane.f32.xlu0 %v821
        %v823 = vpop.xlane.xlu0 %822
        %v824 = vsel %vm814, %v811, -inf
        %825 = vmax.xlane.f32.xlu0 %v824
        %v826 = vpop.xlane.xlu0 %825
        %v827 = vsub.f32 %v758, %v817
        %v828 = vsub.f32 %v761, %v820
        %v829 = vsub.f32 %v808, %v823
        %v830 = vsub.f32 %v811, %v826
        %v831 = vmul.f32 %v827, 1.442695
        %v832 = vpow.pop %v831
        %v833 = vmul.f32 %v828, 1.442695
        %v834 = vpow.pop %v833
        %v835 = vmul.f32 %v829, 1.442695
        %v836 = vpow.pop %v835
        %v837 = vmul.f32 %v830, 1.442695
        %v838 = vpow.pop %v837
        %v839 = vsel %vm814, %v832, 0.0
        %840 = vadd.xlane.f32.xlu0 %v839
        %v841 = vpop.xlane.xlu0 %840
        %v842 = vsel %vm814, %v834, 0.0
        %843 = vadd.xlane.f32.xlu0 %v842
        %v844 = vpop.xlane.xlu0 %843
        %v845 = vsel %vm814, %v836, 0.0
        %846 = vadd.xlane.f32.xlu0 %v845
        %v847 = vpop.xlane.xlu0 %846
        %v848 = vsel %vm814, %v838, 0.0
        %849 = vadd.xlane.f32.xlu0 %v848
        %v850 = vpop.xlane.xlu0 %849
        %v851 = vpack.c.bf16 %v834, %v832
        %v852 = vpack.c.bf16 %v838, %v836
        %853 = vrot.lane.b32.xlu0 %v711, 64
        %v854 = vpop.permute.xlu0 %853
        %v857 = vsel %vm814, %v851, 0
        %859 = vmatprep.subr.bf16.mxu0 0
        %860 = vmatpush1.bf16.msra.mxu0 0
        %861 = vmatprep.subr.bf16.mxu0 0
        %862 = vmatpush1.bf16.msra.mxu0 0
        %863 = vmatprep.subr.bf16.mxu0 0
        %864 = vmatpush1.bf16.msra.mxu0 0
        %865 = vmatprep.subr.bf16.mxu0 0
        %866 = vmatpush1.bf16.msra.mxu0 0
        %867 = vmatprep.subr.bf16.mxu0 0
        %868 = vmatpush1.bf16.msra.mxu0 0
        %869 = vmatprep.subr.bf16.mxu0 0
        %870 = vmatpush1.bf16.msra.mxu0 0
        %871 = vmatprep.subr.bf16.mxu0 0
        %872 = vmatpush1.bf16.msra.mxu0 0
        %873 = vmatprep.subr.bf16.mxu0 0
        %874 = vmatpush1.bf16.msra.mxu0 %v854
        %875 = vmatprep.subr.bf16.mxu0 0
        %876 = vmatpush2.bf16.msra.mxu0 0
        %877 = vmatprep.subr.bf16.mxu0 0
        %878 = vmatpush2.bf16.msra.mxu0 0
        %879 = vmatprep.subr.bf16.mxu0 0
        %880 = vmatpush2.bf16.msra.mxu0 0
        %881 = vmatprep.subr.bf16.mxu0 0
        %882 = vmatpush2.bf16.msra.mxu0 0
        %883 = vmatprep.subr.bf16.mxu0 0
        %884 = vmatpush2.bf16.msra.mxu0 0
        %885 = vmatprep.subr.bf16.mxu0 0
        %886 = vmatpush2.bf16.msra.mxu0 0
        %887 = vmatprep.subr.bf16.mxu0 0
        %888 = vmatpush2.bf16.msra.mxu0 0
        %889 = vmatprep.subr.bf16.mxu0 0
        %890 = vmatpush2.bf16.msra.mxu0 0
        %891 = vmatprep.mubr.bf16.mxu0 0
        %892 = vmatmul.mubr.bf16.gmra.mxu0 %v857
        %v893 = vpop.f32.mrf.mxu0
        %v894 = vadd.f32 0.0, %v893
        %v895 = vpop.f32.mrf.mxu0
        %v896 = vpop.f32.mrf.mxu0
        %v897 = vadd.f32 0.0, %v896
        %v898 = vpop.f32.mrf.mxu0
        %899 = vdwg.mxu0
        %900 = vrot.lane.b32.xlu0 %v712, 64
        %v901 = vpop.permute.xlu0 %900
        %v904 = vsel %vm814, %v852, 0
        %906 = vmatprep.subr.bf16.mxu0 0
        %907 = vmatpush1.bf16.msra.mxu0 0
        %908 = vmatprep.subr.bf16.mxu0 0
        %909 = vmatpush1.bf16.msra.mxu0 0
        %910 = vmatprep.subr.bf16.mxu0 0
        %911 = vmatpush1.bf16.msra.mxu0 0
        %912 = vmatprep.subr.bf16.mxu0 0
        %913 = vmatpush1.bf16.msra.mxu0 0
        %914 = vmatprep.subr.bf16.mxu0 0
        %915 = vmatpush1.bf16.msra.mxu0 0
        %916 = vmatprep.subr.bf16.mxu0 0
        %917 = vmatpush1.bf16.msra.mxu0 0
        %918 = vmatprep.subr.bf16.mxu0 0
        %919 = vmatpush1.bf16.msra.mxu0 0
        %920 = vmatprep.subr.bf16.mxu0 0
        %921 = vmatpush1.bf16.msra.mxu0 %v901
        %922 = vmatprep.subr.bf16.mxu0 0
        %923 = vmatpush2.bf16.msra.mxu0 0
        %924 = vmatprep.subr.bf16.mxu0 0
        %925 = vmatpush2.bf16.msra.mxu0 0
        %926 = vmatprep.subr.bf16.mxu0 0
        %927 = vmatpush2.bf16.msra.mxu0 0
        %928 = vmatprep.subr.bf16.mxu0 0
        %929 = vmatpush2.bf16.msra.mxu0 0
        %930 = vmatprep.subr.bf16.mxu0 0
        %931 = vmatpush2.bf16.msra.mxu0 0
        %932 = vmatprep.subr.bf16.mxu0 0
        %933 = vmatpush2.bf16.msra.mxu0 0
        %934 = vmatprep.subr.bf16.mxu0 0
        %935 = vmatpush2.bf16.msra.mxu0 0
        %936 = vmatprep.subr.bf16.mxu0 0
        %937 = vmatpush2.bf16.msra.mxu0 0
        %938 = vmatprep.mubr.bf16.mxu0 0
        %939 = vmatmul.mubr.bf16.gmra.mxu0 %v904
        %v940 = vpop.f32.mrf.mxu0
        %v941 = vadd.f32 0.0, %v940
        %v942 = vpop.f32.mrf.mxu0
        %v943 = vpop.f32.mrf.mxu0
        %v944 = vadd.f32 0.0, %v943
        %v945 = vpop.f32.mrf.mxu0
        %946 = vdwg.mxu0
        %v947 = vrcp.pop %v841
        %v948 = vrcp.pop %v844
        %v949 = vrcp.pop %v847
        %v950 = vrcp.pop %v850
        %v951 = vmul.f32 %v894, %v947
        %v952 = vmul.f32 %v897, %v948
        %v953 = vmul.f32 %v941, %v949
        %v954 = vmul.f32 %v944, %v950
        %v955 = vpack.c.bf16 %v952, %v951
        %v956 = vpack.c.bf16 %v954, %v953
        %957 = vrot.lane.b32.xlu0 %v711, 120
        %v958 = vpop.permute.xlu0 %957
        %959 = vrot.lane.b32.xlu0 %v711, 88
        %v960 = vpop.permute.xlu0 %959
        %v962 = vsel %vm716, %v958, 0
        %v965 = vsel %vm716, %v960, 0
        %967 = vmatprep.subr.bf16.mxu0 0
        %968 = vmatpush1.bf16.xpose.msra.mxu0 0
        %969 = vmatprep.subr.bf16.mxu0 0
        %970 = vmatpush1.bf16.xpose.msra.mxu0 0
        %971 = vmatprep.subr.bf16.mxu0 0
        %972 = vmatpush1.bf16.xpose.msra.mxu0 0
        %973 = vmatprep.subr.bf16.mxu0 0
        %974 = vmatpush1.bf16.xpose.msra.mxu0 0
        %975 = vmatprep.subr.bf16.mxu0 0
        %976 = vmatpush1.bf16.xpose.msra.mxu0 0
        %977 = vmatprep.subr.bf16.mxu0 0
        %978 = vmatpush1.bf16.xpose.msra.mxu0 0
        %979 = vmatprep.subr.bf16.mxu0 0
        %980 = vmatpush1.bf16.xpose.msra.mxu0 0
        %981 = vmatprep.subr.bf16.mxu0 0
        %982 = vmatpush1.bf16.xpose.msra.mxu0 %v965
        %983 = vmatprep.subr.bf16.mxu0 0
        %984 = vmatpush2.bf16.xpose.msra.mxu0 0
        %985 = vmatprep.subr.bf16.mxu0 0
        %986 = vmatpush2.bf16.xpose.msra.mxu0 0
        %987 = vmatprep.subr.bf16.mxu0 0
        %988 = vmatpush2.bf16.xpose.msra.mxu0 0
        %989 = vmatprep.subr.bf16.mxu0 0
        %990 = vmatpush2.bf16.xpose.msra.mxu0 0
        %991 = vmatprep.subr.bf16.mxu0 0
        %992 = vmatpush2.bf16.xpose.msra.mxu0 0
        %993 = vmatprep.subr.bf16.mxu0 0
        %994 = vmatpush2.bf16.xpose.msra.mxu0 0
        %995 = vmatprep.subr.bf16.mxu0 0
        %996 = vmatpush2.bf16.xpose.msra.mxu0 0
        %997 = vmatprep.subr.bf16.mxu0 0
        %998 = vmatpush2.bf16.xpose.msra.mxu0 0
        %999 = vmatprep.mubr.bf16.mxu0 0
        %1000 = vmatmul.mubr.bf16.gmra.mxu0 %v962
        %v1001 = vpop.f32.mrf.mxu0
        %v1002 = vadd.f32 %v553, %v1001
        %v1003 = vpop.f32.mrf.mxu0
        %v1004 = vpop.f32.mrf.mxu0
        %v1005 = vadd.f32 %v554, %v1004
        %v1006 = vpop.f32.mrf.mxu0
        %1007 = vdwg.mxu0
        %1008 = vrot.lane.b32.xlu0 %v712, 120
        %v1009 = vpop.permute.xlu0 %1008
        %1010 = vrot.lane.b32.xlu0 %v712, 88
        %v1011 = vpop.permute.xlu0 %1010
        %v1013 = vsel %vm716, %v1009, 0
        %v1016 = vsel %vm716, %v1011, 0
        %1018 = vmatprep.subr.bf16.mxu0 0
        %1019 = vmatpush1.bf16.xpose.msra.mxu0 0
        %1020 = vmatprep.subr.bf16.mxu0 0
        %1021 = vmatpush1.bf16.xpose.msra.mxu0 0
        %1022 = vmatprep.subr.bf16.mxu0 0
        %1023 = vmatpush1.bf16.xpose.msra.mxu0 0
        %1024 = vmatprep.subr.bf16.mxu0 0
        %1025 = vmatpush1.bf16.xpose.msra.mxu0 0
        %1026 = vmatprep.subr.bf16.mxu0 0
        %1027 = vmatpush1.bf16.xpose.msra.mxu0 0
        %1028 = vmatprep.subr.bf16.mxu0 0
        %1029 = vmatpush1.bf16.xpose.msra.mxu0 0
        %1030 = vmatprep.subr.bf16.mxu0 0
        %1031 = vmatpush1.bf16.xpose.msra.mxu0 0
        %1032 = vmatprep.subr.bf16.mxu0 0
        %1033 = vmatpush1.bf16.xpose.msra.mxu0 %v1016
        %1034 = vmatprep.subr.bf16.mxu0 0
        %1035 = vmatpush2.bf16.xpose.msra.mxu0 0
        %1036 = vmatprep.subr.bf16.mxu0 0
        %1037 = vmatpush2.bf16.xpose.msra.mxu0 0
        %1038 = vmatprep.subr.bf16.mxu0 0
        %1039 = vmatpush2.bf16.xpose.msra.mxu0 0
        %1040 = vmatprep.subr.bf16.mxu0 0
        %1041 = vmatpush2.bf16.xpose.msra.mxu0 0
        %1042 = vmatprep.subr.bf16.mxu0 0
        %1043 = vmatpush2.bf16.xpose.msra.mxu0 0
        %1044 = vmatprep.subr.bf16.mxu0 0
        %1045 = vmatpush2.bf16.xpose.msra.mxu0 0
        %1046 = vmatprep.subr.bf16.mxu0 0
        %1047 = vmatpush2.bf16.xpose.msra.mxu0 0
        %1048 = vmatprep.subr.bf16.mxu0 0
        %1049 = vmatpush2.bf16.xpose.msra.mxu0 0
        %1050 = vmatprep.mubr.bf16.mxu0 0
        %1051 = vmatmul.mubr.bf16.gmra.mxu0 %v1013
        %v1052 = vpop.f32.mrf.mxu0
        %v1053 = vadd.f32 %v555, %v1052
        %v1054 = vpop.f32.mrf.mxu0
        %v1055 = vpop.f32.mrf.mxu0
        %v1056 = vadd.f32 %v556, %v1055
        %v1057 = vpop.f32.mrf.mxu0
        %1058 = vdwg.mxu0
        %v1059 = vsel %vm814, %v1002, -inf
        %1060 = vmax.xlane.f32.xlu0 %v1059
        %v1061 = vpop.xlane.xlu0 %1060
        %v1062 = vsel %vm814, %v1005, -inf
        %1063 = vmax.xlane.f32.xlu0 %v1062
        %v1064 = vpop.xlane.xlu0 %1063
        %v1065 = vsel %vm814, %v1053, -inf
        %1066 = vmax.xlane.f32.xlu0 %v1065
        %v1067 = vpop.xlane.xlu0 %1066
        %v1068 = vsel %vm814, %v1056, -inf
        %1069 = vmax.xlane.f32.xlu0 %v1068
        %v1070 = vpop.xlane.xlu0 %1069
        %v1071 = vsub.f32 %v1002, %v1061
        %v1072 = vsub.f32 %v1005, %v1064
        %v1073 = vsub.f32 %v1053, %v1067
        %v1074 = vsub.f32 %v1056, %v1070
        %v1075 = vmul.f32 %v1071, 1.442695
        %v1076 = vpow.pop %v1075
        %v1077 = vmul.f32 %v1072, 1.442695
        %v1078 = vpow.pop %v1077
        %v1079 = vmul.f32 %v1073, 1.442695
        %v1080 = vpow.pop %v1079
        %v1081 = vmul.f32 %v1074, 1.442695
        %v1082 = vpow.pop %v1081
        %v1083 = vsel %vm814, %v1076, 0.0
        %1084 = vadd.xlane.f32.xlu0 %v1083
        %v1085 = vpop.xlane.xlu0 %1084
        %v1086 = vsel %vm814, %v1078, 0.0
        %1087 = vadd.xlane.f32.xlu0 %v1086
        %v1088 = vpop.xlane.xlu0 %1087
        %v1089 = vsel %vm814, %v1080, 0.0
        %1090 = vadd.xlane.f32.xlu0 %v1089
        %v1091 = vpop.xlane.xlu0 %1090
        %v1092 = vsel %vm814, %v1082, 0.0
        %1093 = vadd.xlane.f32.xlu0 %v1092
        %v1094 = vpop.xlane.xlu0 %1093
        %v1095 = vpack.c.bf16 %v1078, %v1076
        %v1096 = vpack.c.bf16 %v1082, %v1080
        %1097 = vrot.lane.b32.xlu0 %v711, 56
        %v1098 = vpop.permute.xlu0 %1097
        %v1101 = vsel %vm814, %v1095, 0
        %1103 = vmatprep.subr.bf16.mxu0 0
        %1104 = vmatpush1.bf16.msra.mxu0 0
        %1105 = vmatprep.subr.bf16.mxu0 0
        %1106 = vmatpush1.bf16.msra.mxu0 0
        %1107 = vmatprep.subr.bf16.mxu0 0
        %1108 = vmatpush1.bf16.msra.mxu0 0
        %1109 = vmatprep.subr.bf16.mxu0 0
        %1110 = vmatpush1.bf16.msra.mxu0 0
        %1111 = vmatprep.subr.bf16.mxu0 0
        %1112 = vmatpush1.bf16.msra.mxu0 0
        %1113 = vmatprep.subr.bf16.mxu0 0
        %1114 = vmatpush1.bf16.msra.mxu0 0
        %1115 = vmatprep.subr.bf16.mxu0 0
        %1116 = vmatpush1.bf16.msra.mxu0 0
        %1117 = vmatprep.subr.bf16.mxu0 0
        %1118 = vmatpush1.bf16.msra.mxu0 %v1098
        %1119 = vmatprep.subr.bf16.mxu0 0
        %1120 = vmatpush2.bf16.msra.mxu0 0
        %1121 = vmatprep.subr.bf16.mxu0 0
        %1122 = vmatpush2.bf16.msra.mxu0 0
        %1123 = vmatprep.subr.bf16.mxu0 0
        %1124 = vmatpush2.bf16.msra.mxu0 0
        %1125 = vmatprep.subr.bf16.mxu0 0
        %1126 = vmatpush2.bf16.msra.mxu0 0
        %1127 = vmatprep.subr.bf16.mxu0 0
        %1128 = vmatpush2.bf16.msra.mxu0 0
        %1129 = vmatprep.subr.bf16.mxu0 0
        %1130 = vmatpush2.bf16.msra.mxu0 0
        %1131 = vmatprep.subr.bf16.mxu0 0
        %1132 = vmatpush2.bf16.msra.mxu0 0
        %1133 = vmatprep.subr.bf16.mxu0 0
        %1134 = vmatpush2.bf16.msra.mxu0 0
        %1135 = vmatprep.mubr.bf16.mxu0 0
        %1136 = vmatmul.mubr.bf16.gmra.mxu0 %v1101
        %v1137 = vpop.f32.mrf.mxu0
        %v1138 = vadd.f32 0.0, %v1137
        %v1139 = vpop.f32.mrf.mxu0
        %v1140 = vpop.f32.mrf.mxu0
        %v1141 = vadd.f32 0.0, %v1140
        %v1142 = vpop.f32.mrf.mxu0
        %1143 = vdwg.mxu0
        %1144 = vrot.lane.b32.xlu0 %v712, 56
        %v1145 = vpop.permute.xlu0 %1144
        %v1148 = vsel %vm814, %v1096, 0
        %1150 = vmatprep.subr.bf16.mxu0 0
        %1151 = vmatpush1.bf16.msra.mxu0 0
        %1152 = vmatprep.subr.bf16.mxu0 0
        %1153 = vmatpush1.bf16.msra.mxu0 0
        %1154 = vmatprep.subr.bf16.mxu0 0
        %1155 = vmatpush1.bf16.msra.mxu0 0
        %1156 = vmatprep.subr.bf16.mxu0 0
        %1157 = vmatpush1.bf16.msra.mxu0 0
        %1158 = vmatprep.subr.bf16.mxu0 0
        %1159 = vmatpush1.bf16.msra.mxu0 0
        %1160 = vmatprep.subr.bf16.mxu0 0
        %1161 = vmatpush1.bf16.msra.mxu0 0
        %1162 = vmatprep.subr.bf16.mxu0 0
        %1163 = vmatpush1.bf16.msra.mxu0 0
        %1164 = vmatprep.subr.bf16.mxu0 0
        %1165 = vmatpush1.bf16.msra.mxu0 %v1145
        %1166 = vmatprep.subr.bf16.mxu0 0
        %1167 = vmatpush2.bf16.msra.mxu0 0
        %1168 = vmatprep.subr.bf16.mxu0 0
        %1169 = vmatpush2.bf16.msra.mxu0 0
        %1170 = vmatprep.subr.bf16.mxu0 0
        %1171 = vmatpush2.bf16.msra.mxu0 0
        %1172 = vmatprep.subr.bf16.mxu0 0
        %1173 = vmatpush2.bf16.msra.mxu0 0
        %1174 = vmatprep.subr.bf16.mxu0 0
        %1175 = vmatpush2.bf16.msra.mxu0 0
        %1176 = vmatprep.subr.bf16.mxu0 0
        %1177 = vmatpush2.bf16.msra.mxu0 0
        %1178 = vmatprep.subr.bf16.mxu0 0
        %1179 = vmatpush2.bf16.msra.mxu0 0
        %1180 = vmatprep.subr.bf16.mxu0 0
        %1181 = vmatpush2.bf16.msra.mxu0 0
        %1182 = vmatprep.mubr.bf16.mxu0 0
        %1183 = vmatmul.mubr.bf16.gmra.mxu0 %v1148
        %v1184 = vpop.f32.mrf.mxu0
        %v1185 = vadd.f32 0.0, %v1184
        %v1186 = vpop.f32.mrf.mxu0
        %v1187 = vpop.f32.mrf.mxu0
        %v1188 = vadd.f32 0.0, %v1187
        %v1189 = vpop.f32.mrf.mxu0
        %1190 = vdwg.mxu0
        %v1191 = vrcp.pop %v1085
        %v1192 = vrcp.pop %v1088
        %v1193 = vrcp.pop %v1091
        %v1194 = vrcp.pop %v1094
        %v1195 = vmul.f32 %v1138, %v1191
        %v1196 = vmul.f32 %v1141, %v1192
        %v1197 = vmul.f32 %v1185, %v1193
        %v1198 = vmul.f32 %v1188, %v1194
        %v1199 = vpack.c.bf16 %v1196, %v1195
        %v1200 = vpack.c.bf16 %v1198, %v1197
        %v1202 = vsel %vm716, %v1199, 0
        %v1205 = vsel %vm716, %v1200, 0
        %vm1207 = vcmask 1043456
        %v1209 = vsel %vm1207, %v708, 0
        %1211 = vmatprep.subr.bf16.mxu0 0
        %1212 = vmatpush1.bf16.msra.mxu0 0
        %1213 = vmatprep.subr.bf16.mxu0 0
        %1214 = vmatpush1.bf16.msra.mxu0 0
        %1215 = vmatprep.subr.bf16.mxu0 0
        %1216 = vmatpush1.bf16.msra.mxu0 0
        %1217 = vmatprep.subr.bf16.mxu0 0
        %1218 = vmatpush1.bf16.msra.mxu0 0
        %1219 = vmatprep.subr.bf16.mxu0 0
        %1220 = vmatpush1.bf16.msra.mxu0 0
        %1221 = vmatprep.subr.bf16.mxu0 0
        %1222 = vmatpush1.bf16.msra.mxu0 0
        %1223 = vmatprep.subr.bf16.mxu0 0
        %1224 = vmatpush1.bf16.msra.mxu0 0
        %1225 = vmatprep.subr.bf16.mxu0 0
        %1226 = vmatpush1.bf16.msra.mxu0 %v1209
        %1227 = vmatprep.subr.bf16.mxu0 0
        %1228 = vmatpush2.bf16.msra.mxu0 0
        %1229 = vmatprep.subr.bf16.mxu0 0
        %1230 = vmatpush2.bf16.msra.mxu0 0
        %1231 = vmatprep.subr.bf16.mxu0 0
        %1232 = vmatpush2.bf16.msra.mxu0 0
        %1233 = vmatprep.subr.bf16.mxu0 0
        %1234 = vmatpush2.bf16.msra.mxu0 0
        %1235 = vmatprep.subr.bf16.mxu0 0
        %1236 = vmatpush2.bf16.msra.mxu0 0
        %1237 = vmatprep.subr.bf16.mxu0 0
        %1238 = vmatpush2.bf16.msra.mxu0 0
        %1239 = vmatprep.subr.bf16.mxu0 0
        %1240 = vmatpush2.bf16.msra.mxu0 0
        %1241 = vmatprep.subr.bf16.mxu0 0
        %1242 = vmatpush2.bf16.msra.mxu0 0
        %1243 = vmatprep.mubr.bf16.mxu0 0
        %1244 = vmatmul.mubr.bf16.gmra.mxu0 %v1202
        %v1245 = vpop.f32.mrf.mxu0
        %v1246 = vadd.f32 0.0, %v1245
        %v1247 = vpop.f32.mrf.mxu0
        %v1248 = vpop.f32.mrf.mxu0
        %v1249 = vadd.f32 0.0, %v1248
        %v1250 = vpop.f32.mrf.mxu0
        %1251 = vmatprep.mubr.bf16.mxu0 0
        %1252 = vmatmul.mubr.bf16.gmra.mxu0 %v1205
        %v1253 = vpop.f32.mrf.mxu0
        %v1254 = vadd.f32 0.0, %v1253
        %v1255 = vpop.f32.mrf.mxu0
        %v1256 = vpop.f32.mrf.mxu0
        %v1257 = vadd.f32 0.0, %v1256
        %v1258 = vpop.f32.mrf.mxu0
        %1259 = vdwg.mxu0
        %v1261 = vsel %vm716, %v955, 0
        %v1264 = vsel %vm716, %v956, 0
        %v1267 = vsel %vm1207, %v707, 0
        %1269 = vmatprep.subr.bf16.mxu0 0
        %1270 = vmatpush1.bf16.msra.mxu0 0
        %1271 = vmatprep.subr.bf16.mxu0 0
        %1272 = vmatpush1.bf16.msra.mxu0 0
        %1273 = vmatprep.subr.bf16.mxu0 0
        %1274 = vmatpush1.bf16.msra.mxu0 0
        %1275 = vmatprep.subr.bf16.mxu0 0
        %1276 = vmatpush1.bf16.msra.mxu0 0
        %1277 = vmatprep.subr.bf16.mxu0 0
        %1278 = vmatpush1.bf16.msra.mxu0 0
        %1279 = vmatprep.subr.bf16.mxu0 0
        %1280 = vmatpush1.bf16.msra.mxu0 0
        %1281 = vmatprep.subr.bf16.mxu0 0
        %1282 = vmatpush1.bf16.msra.mxu0 0
        %1283 = vmatprep.subr.bf16.mxu0 0
        %1284 = vmatpush1.bf16.msra.mxu0 %v1267
        %1285 = vmatprep.subr.bf16.mxu0 0
        %1286 = vmatpush2.bf16.msra.mxu0 0
        %1287 = vmatprep.subr.bf16.mxu0 0
        %1288 = vmatpush2.bf16.msra.mxu0 0
        %1289 = vmatprep.subr.bf16.mxu0 0
        %1290 = vmatpush2.bf16.msra.mxu0 0
        %1291 = vmatprep.subr.bf16.mxu0 0
        %1292 = vmatpush2.bf16.msra.mxu0 0
        %1293 = vmatprep.subr.bf16.mxu0 0
        %1294 = vmatpush2.bf16.msra.mxu0 0
        %1295 = vmatprep.subr.bf16.mxu0 0
        %1296 = vmatpush2.bf16.msra.mxu0 0
        %1297 = vmatprep.subr.bf16.mxu0 0
        %1298 = vmatpush2.bf16.msra.mxu0 0
        %1299 = vmatprep.subr.bf16.mxu0 0
        %1300 = vmatpush2.bf16.msra.mxu0 0
        %1301 = vmatprep.mubr.bf16.mxu0 0
        %1302 = vmatmul.mubr.bf16.gmra.mxu0 %v1261
        %v1303 = vpop.f32.mrf.mxu0
        %v1304 = vadd.f32 %v1246, %v1303
        %v1305 = vpop.f32.mrf.mxu0
        %v1306 = vpop.f32.mrf.mxu0
        %v1307 = vadd.f32 %v1249, %v1306
        %v1308 = vpop.f32.mrf.mxu0
        %1309 = vmatprep.mubr.bf16.mxu0 0
        %1310 = vmatmul.mubr.bf16.gmra.mxu0 %v1264
        %v1311 = vpop.f32.mrf.mxu0
        %v1312 = vadd.f32 %v1254, %v1311
        %v1313 = vpop.f32.mrf.mxu0
        %v1314 = vpop.f32.mrf.mxu0
        %v1315 = vadd.f32 %v1257, %v1314
        %v1316 = vpop.f32.mrf.mxu0
        %1317 = vdwg.mxu0
        %1318 = vrot.lane.b32.xlu0 %v711, 112
        %v1319 = vpop.permute.xlu0 %1318
        %1320 = vrot.lane.b32.xlu0 %v711, 80
        %v1321 = vpop.permute.xlu0 %1320
        %v1323 = vsel %vm716, %v1319, 0
        %v1326 = vsel %vm716, %v1321, 0
        %1328 = vmatprep.subr.bf16.mxu0 0
        %1329 = vmatpush1.bf16.xpose.msra.mxu0 0
        %1330 = vmatprep.subr.bf16.mxu0 0
        %1331 = vmatpush1.bf16.xpose.msra.mxu0 0
        %1332 = vmatprep.subr.bf16.mxu0 0
        %1333 = vmatpush1.bf16.xpose.msra.mxu0 0
        %1334 = vmatprep.subr.bf16.mxu0 0
        %1335 = vmatpush1.bf16.xpose.msra.mxu0 0
        %1336 = vmatprep.subr.bf16.mxu0 0
        %1337 = vmatpush1.bf16.xpose.msra.mxu0 0
        %1338 = vmatprep.subr.bf16.mxu0 0
        %1339 = vmatpush1.bf16.xpose.msra.mxu0 0
        %1340 = vmatprep.subr.bf16.mxu0 0
        %1341 = vmatpush1.bf16.xpose.msra.mxu0 0
        %1342 = vmatprep.subr.bf16.mxu0 0
        %1343 = vmatpush1.bf16.xpose.msra.mxu0 %v1326
        %1344 = vmatprep.subr.bf16.mxu0 0
        %1345 = vmatpush2.bf16.xpose.msra.mxu0 0
        %1346 = vmatprep.subr.bf16.mxu0 0
        %1347 = vmatpush2.bf16.xpose.msra.mxu0 0
        %1348 = vmatprep.subr.bf16.mxu0 0
        %1349 = vmatpush2.bf16.xpose.msra.mxu0 0
        %1350 = vmatprep.subr.bf16.mxu0 0
        %1351 = vmatpush2.bf16.xpose.msra.mxu0 0
        %1352 = vmatprep.subr.bf16.mxu0 0
        %1353 = vmatpush2.bf16.xpose.msra.mxu0 0
        %1354 = vmatprep.subr.bf16.mxu0 0
        %1355 = vmatpush2.bf16.xpose.msra.mxu0 0
        %1356 = vmatprep.subr.bf16.mxu0 0
        %1357 = vmatpush2.bf16.xpose.msra.mxu0 0
        %1358 = vmatprep.subr.bf16.mxu0 0
        %1359 = vmatpush2.bf16.xpose.msra.mxu0 0
        %1360 = vmatprep.mubr.bf16.mxu0 0
        %1361 = vmatmul.mubr.bf16.gmra.mxu0 %v1323
        %v1362 = vpop.f32.mrf.mxu0
        %v1363 = vadd.f32 %v553, %v1362
        %v1364 = vpop.f32.mrf.mxu0
        %v1365 = vpop.f32.mrf.mxu0
        %v1366 = vadd.f32 %v554, %v1365
        %v1367 = vpop.f32.mrf.mxu0
        %1368 = vdwg.mxu0
        %1369 = vrot.lane.b32.xlu0 %v712, 112
        %v1370 = vpop.permute.xlu0 %1369
        %1371 = vrot.lane.b32.xlu0 %v712, 80
        %v1372 = vpop.permute.xlu0 %1371
        %v1374 = vsel %vm716, %v1370, 0
        %v1377 = vsel %vm716, %v1372, 0
        %1379 = vmatprep.subr.bf16.mxu0 0
        %1380 = vmatpush1.bf16.xpose.msra.mxu0 0
        %1381 = vmatprep.subr.bf16.mxu0 0
        %1382 = vmatpush1.bf16.xpose.msra.mxu0 0
        %1383 = vmatprep.subr.bf16.mxu0 0
        %1384 = vmatpush1.bf16.xpose.msra.mxu0 0
        %1385 = vmatprep.subr.bf16.mxu0 0
        %1386 = vmatpush1.bf16.xpose.msra.mxu0 0
        %1387 = vmatprep.subr.bf16.mxu0 0
        %1388 = vmatpush1.bf16.xpose.msra.mxu0 0
        %1389 = vmatprep.subr.bf16.mxu0 0
        %1390 = vmatpush1.bf16.xpose.msra.mxu0 0
        %1391 = vmatprep.subr.bf16.mxu0 0
        %1392 = vmatpush1.bf16.xpose.msra.mxu0 0
        %1393 = vmatprep.subr.bf16.mxu0 0
        %1394 = vmatpush1.bf16.xpose.msra.mxu0 %v1377
        %1395 = vmatprep.subr.bf16.mxu0 0
        %1396 = vmatpush2.bf16.xpose.msra.mxu0 0
        %1397 = vmatprep.subr.bf16.mxu0 0
        %1398 = vmatpush2.bf16.xpose.msra.mxu0 0
        %1399 = vmatprep.subr.bf16.mxu0 0
        %1400 = vmatpush2.bf16.xpose.msra.mxu0 0
        %1401 = vmatprep.subr.bf16.mxu0 0
        %1402 = vmatpush2.bf16.xpose.msra.mxu0 0
        %1403 = vmatprep.subr.bf16.mxu0 0
        %1404 = vmatpush2.bf16.xpose.msra.mxu0 0
        %1405 = vmatprep.subr.bf16.mxu0 0
        %1406 = vmatpush2.bf16.xpose.msra.mxu0 0
        %1407 = vmatprep.subr.bf16.mxu0 0
        %1408 = vmatpush2.bf16.xpose.msra.mxu0 0
        %1409 = vmatprep.subr.bf16.mxu0 0
        %1410 = vmatpush2.bf16.xpose.msra.mxu0 0
        %1411 = vmatprep.mubr.bf16.mxu0 0
        %1412 = vmatmul.mubr.bf16.gmra.mxu0 %v1374
        %v1413 = vpop.f32.mrf.mxu0
        %v1414 = vadd.f32 %v555, %v1413
        %v1415 = vpop.f32.mrf.mxu0
        %v1416 = vpop.f32.mrf.mxu0
        %v1417 = vadd.f32 %v556, %v1416
        %v1418 = vpop.f32.mrf.mxu0
        %1419 = vdwg.mxu0
        %v1420 = vsel %vm814, %v1363, -inf
        %1421 = vmax.xlane.f32.xlu0 %v1420
        %v1422 = vpop.xlane.xlu0 %1421
        %v1423 = vsel %vm814, %v1366, -inf
        %1424 = vmax.xlane.f32.xlu0 %v1423
        %v1425 = vpop.xlane.xlu0 %1424
        %v1426 = vsel %vm814, %v1414, -inf
        %1427 = vmax.xlane.f32.xlu0 %v1426
        %v1428 = vpop.xlane.xlu0 %1427
        %v1429 = vsel %vm814, %v1417, -inf
        %1430 = vmax.xlane.f32.xlu0 %v1429
        %v1431 = vpop.xlane.xlu0 %1430
        %v1432 = vsub.f32 %v1363, %v1422
        %v1433 = vsub.f32 %v1366, %v1425
        %v1434 = vsub.f32 %v1414, %v1428
        %v1435 = vsub.f32 %v1417, %v1431
        %v1436 = vmul.f32 %v1432, 1.442695
        %v1437 = vpow.pop %v1436
        %v1438 = vmul.f32 %v1433, 1.442695
        %v1439 = vpow.pop %v1438
        %v1440 = vmul.f32 %v1434, 1.442695
        %v1441 = vpow.pop %v1440
        %v1442 = vmul.f32 %v1435, 1.442695
        %v1443 = vpow.pop %v1442
        %v1444 = vsel %vm814, %v1437, 0.0
        %1445 = vadd.xlane.f32.xlu0 %v1444
        %v1446 = vpop.xlane.xlu0 %1445
        %v1447 = vsel %vm814, %v1439, 0.0
        %1448 = vadd.xlane.f32.xlu0 %v1447
        %v1449 = vpop.xlane.xlu0 %1448
        %v1450 = vsel %vm814, %v1441, 0.0
        %1451 = vadd.xlane.f32.xlu0 %v1450
        %v1452 = vpop.xlane.xlu0 %1451
        %v1453 = vsel %vm814, %v1443, 0.0
        %1454 = vadd.xlane.f32.xlu0 %v1453
        %v1455 = vpop.xlane.xlu0 %1454
        %v1456 = vpack.c.bf16 %v1439, %v1437
        %v1457 = vpack.c.bf16 %v1443, %v1441
        %1458 = vrot.lane.b32.xlu0 %v711, 48
        %v1459 = vpop.permute.xlu0 %1458
        %v1462 = vsel %vm814, %v1456, 0
        %1464 = vmatprep.subr.bf16.mxu0 0
        %1465 = vmatpush1.bf16.msra.mxu0 0
        %1466 = vmatprep.subr.bf16.mxu0 0
        %1467 = vmatpush1.bf16.msra.mxu0 0
        %1468 = vmatprep.subr.bf16.mxu0 0
        %1469 = vmatpush1.bf16.msra.mxu0 0
        %1470 = vmatprep.subr.bf16.mxu0 0
        %1471 = vmatpush1.bf16.msra.mxu0 0
        %1472 = vmatprep.subr.bf16.mxu0 0
        %1473 = vmatpush1.bf16.msra.mxu0 0
        %1474 = vmatprep.subr.bf16.mxu0 0
        %1475 = vmatpush1.bf16.msra.mxu0 0
        %1476 = vmatprep.subr.bf16.mxu0 0
        %1477 = vmatpush1.bf16.msra.mxu0 0
        %1478 = vmatprep.subr.bf16.mxu0 0
        %1479 = vmatpush1.bf16.msra.mxu0 %v1459
        %1480 = vmatprep.subr.bf16.mxu0 0
        %1481 = vmatpush2.bf16.msra.mxu0 0
        %1482 = vmatprep.subr.bf16.mxu0 0
        %1483 = vmatpush2.bf16.msra.mxu0 0
        %1484 = vmatprep.subr.bf16.mxu0 0
        %1485 = vmatpush2.bf16.msra.mxu0 0
        %1486 = vmatprep.subr.bf16.mxu0 0
        %1487 = vmatpush2.bf16.msra.mxu0 0
        %1488 = vmatprep.subr.bf16.mxu0 0
        %1489 = vmatpush2.bf16.msra.mxu0 0
        %1490 = vmatprep.subr.bf16.mxu0 0
        %1491 = vmatpush2.bf16.msra.mxu0 0
        %1492 = vmatprep.subr.bf16.mxu0 0
        %1493 = vmatpush2.bf16.msra.mxu0 0
        %1494 = vmatprep.subr.bf16.mxu0 0
        %1495 = vmatpush2.bf16.msra.mxu0 0
        %1496 = vmatprep.mubr.bf16.mxu0 0
        %1497 = vmatmul.mubr.bf16.gmra.mxu0 %v1462
        %v1498 = vpop.f32.mrf.mxu0
        %v1499 = vadd.f32 0.0, %v1498
        %v1500 = vpop.f32.mrf.mxu0
        %v1501 = vpop.f32.mrf.mxu0
        %v1502 = vadd.f32 0.0, %v1501
        %v1503 = vpop.f32.mrf.mxu0
        %1504 = vdwg.mxu0
        %1505 = vrot.lane.b32.xlu0 %v712, 48
        %v1506 = vpop.permute.xlu0 %1505
        %v1509 = vsel %vm814, %v1457, 0
        %1511 = vmatprep.subr.bf16.mxu0 0
        %1512 = vmatpush1.bf16.msra.mxu0 0
        %1513 = vmatprep.subr.bf16.mxu0 0
        %1514 = vmatpush1.bf16.msra.mxu0 0
        %1515 = vmatprep.subr.bf16.mxu0 0
        %1516 = vmatpush1.bf16.msra.mxu0 0
        %1517 = vmatprep.subr.bf16.mxu0 0
        %1518 = vmatpush1.bf16.msra.mxu0 0
        %1519 = vmatprep.subr.bf16.mxu0 0
        %1520 = vmatpush1.bf16.msra.mxu0 0
        %1521 = vmatprep.subr.bf16.mxu0 0
        %1522 = vmatpush1.bf16.msra.mxu0 0
        %1523 = vmatprep.subr.bf16.mxu0 0
        %1524 = vmatpush1.bf16.msra.mxu0 0
        %1525 = vmatprep.subr.bf16.mxu0 0
        %1526 = vmatpush1.bf16.msra.mxu0 %v1506
        %1527 = vmatprep.subr.bf16.mxu0 0
        %1528 = vmatpush2.bf16.msra.mxu0 0
        %1529 = vmatprep.subr.bf16.mxu0 0
        %1530 = vmatpush2.bf16.msra.mxu0 0
        %1531 = vmatprep.subr.bf16.mxu0 0
        %1532 = vmatpush2.bf16.msra.mxu0 0
        %1533 = vmatprep.subr.bf16.mxu0 0
        %1534 = vmatpush2.bf16.msra.mxu0 0
        %1535 = vmatprep.subr.bf16.mxu0 0
        %1536 = vmatpush2.bf16.msra.mxu0 0
        %1537 = vmatprep.subr.bf16.mxu0 0
        %1538 = vmatpush2.bf16.msra.mxu0 0
        %1539 = vmatprep.subr.bf16.mxu0 0
        %1540 = vmatpush2.bf16.msra.mxu0 0
        %1541 = vmatprep.subr.bf16.mxu0 0
        %1542 = vmatpush2.bf16.msra.mxu0 0
        %1543 = vmatprep.mubr.bf16.mxu0 0
        %1544 = vmatmul.mubr.bf16.gmra.mxu0 %v1509
        %v1545 = vpop.f32.mrf.mxu0
        %v1546 = vadd.f32 0.0, %v1545
        %v1547 = vpop.f32.mrf.mxu0
        %v1548 = vpop.f32.mrf.mxu0
        %v1549 = vadd.f32 0.0, %v1548
        %v1550 = vpop.f32.mrf.mxu0
        %1551 = vdwg.mxu0
        %v1552 = vrcp.pop %v1446
        %v1553 = vrcp.pop %v1449
        %v1554 = vrcp.pop %v1452
        %v1555 = vrcp.pop %v1455
        %v1556 = vmul.f32 %v1499, %v1552
        %v1557 = vmul.f32 %v1502, %v1553
        %v1558 = vmul.f32 %v1546, %v1554
        %v1559 = vmul.f32 %v1549, %v1555
        %v1560 = vpack.c.bf16 %v1557, %v1556
        %v1561 = vpack.c.bf16 %v1559, %v1558
        %v1563 = vsel %vm716, %v1560, 0
        %v1566 = vsel %vm716, %v1561, 0
        %v1569 = vsel %vm1207, %v709, 0
        %1571 = vmatprep.subr.bf16.mxu0 0
        %1572 = vmatpush1.bf16.msra.mxu0 0
        %1573 = vmatprep.subr.bf16.mxu0 0
        %1574 = vmatpush1.bf16.msra.mxu0 0
        %1575 = vmatprep.subr.bf16.mxu0 0
        %1576 = vmatpush1.bf16.msra.mxu0 0
        %1577 = vmatprep.subr.bf16.mxu0 0
        %1578 = vmatpush1.bf16.msra.mxu0 0
        %1579 = vmatprep.subr.bf16.mxu0 0
        %1580 = vmatpush1.bf16.msra.mxu0 0
        %1581 = vmatprep.subr.bf16.mxu0 0
        %1582 = vmatpush1.bf16.msra.mxu0 0
        %1583 = vmatprep.subr.bf16.mxu0 0
        %1584 = vmatpush1.bf16.msra.mxu0 0
        %1585 = vmatprep.subr.bf16.mxu0 0
        %1586 = vmatpush1.bf16.msra.mxu0 %v1569
        %1587 = vmatprep.subr.bf16.mxu0 0
        %1588 = vmatpush2.bf16.msra.mxu0 0
        %1589 = vmatprep.subr.bf16.mxu0 0
        %1590 = vmatpush2.bf16.msra.mxu0 0
        %1591 = vmatprep.subr.bf16.mxu0 0
        %1592 = vmatpush2.bf16.msra.mxu0 0
        %1593 = vmatprep.subr.bf16.mxu0 0
        %1594 = vmatpush2.bf16.msra.mxu0 0
        %1595 = vmatprep.subr.bf16.mxu0 0
        %1596 = vmatpush2.bf16.msra.mxu0 0
        %1597 = vmatprep.subr.bf16.mxu0 0
        %1598 = vmatpush2.bf16.msra.mxu0 0
        %1599 = vmatprep.subr.bf16.mxu0 0
        %1600 = vmatpush2.bf16.msra.mxu0 0
        %1601 = vmatprep.subr.bf16.mxu0 0
        %1602 = vmatpush2.bf16.msra.mxu0 0
        %1603 = vmatprep.mubr.bf16.mxu0 0
        %1604 = vmatmul.mubr.bf16.gmra.mxu0 %v1563
        %v1605 = vpop.f32.mrf.mxu0
        %v1606 = vadd.f32 0.0, %v1605
        %v1607 = vpop.f32.mrf.mxu0
        %v1608 = vpop.f32.mrf.mxu0
        %v1609 = vadd.f32 0.0, %v1608
        %v1610 = vpop.f32.mrf.mxu0
        %1611 = vmatprep.mubr.bf16.mxu0 0
        %1612 = vmatmul.mubr.bf16.gmra.mxu0 %v1566
        %v1613 = vpop.f32.mrf.mxu0
        %v1614 = vadd.f32 0.0, %v1613
        %v1615 = vpop.f32.mrf.mxu0
        %v1616 = vpop.f32.mrf.mxu0
        %v1617 = vadd.f32 0.0, %v1616
        %v1618 = vpop.f32.mrf.mxu0
        %1619 = vdwg.mxu0
        %v1620 = vadd.f32 %v1304, %v1606
        %v1621 = vadd.f32 %v1307, %v1609
        %v1622 = vadd.f32 %v1312, %v1614
        %v1623 = vadd.f32 %v1315, %v1617
        %1624 = vrot.lane.b32.xlu0 %v711, 104
        %v1625 = vpop.permute.xlu0 %1624
        %1626 = vrot.lane.b32.xlu0 %v711, 72
        %v1627 = vpop.permute.xlu0 %1626
        %v1629 = vsel %vm716, %v1625, 0
        %v1632 = vsel %vm716, %v1627, 0
        %1634 = vmatprep.subr.bf16.mxu0 0
        %1635 = vmatpush1.bf16.xpose.msra.mxu0 0
        %1636 = vmatprep.subr.bf16.mxu0 0
        %1637 = vmatpush1.bf16.xpose.msra.mxu0 0
        %1638 = vmatprep.subr.bf16.mxu0 0
        %1639 = vmatpush1.bf16.xpose.msra.mxu0 0
        %1640 = vmatprep.subr.bf16.mxu0 0
        %1641 = vmatpush1.bf16.xpose.msra.mxu0 0
        %1642 = vmatprep.subr.bf16.mxu0 0
        %1643 = vmatpush1.bf16.xpose.msra.mxu0 0
        %1644 = vmatprep.subr.bf16.mxu0 0
        %1645 = vmatpush1.bf16.xpose.msra.mxu0 0
        %1646 = vmatprep.subr.bf16.mxu0 0
        %1647 = vmatpush1.bf16.xpose.msra.mxu0 0
        %1648 = vmatprep.subr.bf16.mxu0 0
        %1649 = vmatpush1.bf16.xpose.msra.mxu0 %v1632
        %1650 = vmatprep.subr.bf16.mxu0 0
        %1651 = vmatpush2.bf16.xpose.msra.mxu0 0
        %1652 = vmatprep.subr.bf16.mxu0 0
        %1653 = vmatpush2.bf16.xpose.msra.mxu0 0
        %1654 = vmatprep.subr.bf16.mxu0 0
        %1655 = vmatpush2.bf16.xpose.msra.mxu0 0
        %1656 = vmatprep.subr.bf16.mxu0 0
        %1657 = vmatpush2.bf16.xpose.msra.mxu0 0
        %1658 = vmatprep.subr.bf16.mxu0 0
        %1659 = vmatpush2.bf16.xpose.msra.mxu0 0
        %1660 = vmatprep.subr.bf16.mxu0 0
        %1661 = vmatpush2.bf16.xpose.msra.mxu0 0
        %1662 = vmatprep.subr.bf16.mxu0 0
        %1663 = vmatpush2.bf16.xpose.msra.mxu0 0
        %1664 = vmatprep.subr.bf16.mxu0 0
        %1665 = vmatpush2.bf16.xpose.msra.mxu0 0
        %1666 = vmatprep.mubr.bf16.mxu0 0
        %1667 = vmatmul.mubr.bf16.gmra.mxu0 %v1629
        %v1668 = vpop.f32.mrf.mxu0
        %v1669 = vadd.f32 %v553, %v1668
        %v1670 = vpop.f32.mrf.mxu0
        %v1671 = vpop.f32.mrf.mxu0
        %v1672 = vadd.f32 %v554, %v1671
        %v1673 = vpop.f32.mrf.mxu0
        %1674 = vdwg.mxu0
        %1675 = vrot.lane.b32.xlu0 %v712, 104
        %v1676 = vpop.permute.xlu0 %1675
        %1677 = vrot.lane.b32.xlu0 %v712, 72
        %v1678 = vpop.permute.xlu0 %1677
        %v1680 = vsel %vm716, %v1676, 0
        %v1683 = vsel %vm716, %v1678, 0
        %1685 = vmatprep.subr.bf16.mxu0 0
        %1686 = vmatpush1.bf16.xpose.msra.mxu0 0
        %1687 = vmatprep.subr.bf16.mxu0 0
        %1688 = vmatpush1.bf16.xpose.msra.mxu0 0
        %1689 = vmatprep.subr.bf16.mxu0 0
        %1690 = vmatpush1.bf16.xpose.msra.mxu0 0
        %1691 = vmatprep.subr.bf16.mxu0 0
        %1692 = vmatpush1.bf16.xpose.msra.mxu0 0
        %1693 = vmatprep.subr.bf16.mxu0 0
        %1694 = vmatpush1.bf16.xpose.msra.mxu0 0
        %1695 = vmatprep.subr.bf16.mxu0 0
        %1696 = vmatpush1.bf16.xpose.msra.mxu0 0
        %1697 = vmatprep.subr.bf16.mxu0 0
        %1698 = vmatpush1.bf16.xpose.msra.mxu0 0
        %1699 = vmatprep.subr.bf16.mxu0 0
        %1700 = vmatpush1.bf16.xpose.msra.mxu0 %v1683
        %1701 = vmatprep.subr.bf16.mxu0 0
        %1702 = vmatpush2.bf16.xpose.msra.mxu0 0
        %1703 = vmatprep.subr.bf16.mxu0 0
        %1704 = vmatpush2.bf16.xpose.msra.mxu0 0
        %1705 = vmatprep.subr.bf16.mxu0 0
        %1706 = vmatpush2.bf16.xpose.msra.mxu0 0
        %1707 = vmatprep.subr.bf16.mxu0 0
        %1708 = vmatpush2.bf16.xpose.msra.mxu0 0
        %1709 = vmatprep.subr.bf16.mxu0 0
        %1710 = vmatpush2.bf16.xpose.msra.mxu0 0
        %1711 = vmatprep.subr.bf16.mxu0 0
        %1712 = vmatpush2.bf16.xpose.msra.mxu0 0
        %1713 = vmatprep.subr.bf16.mxu0 0
        %1714 = vmatpush2.bf16.xpose.msra.mxu0 0
        %1715 = vmatprep.subr.bf16.mxu0 0
        %1716 = vmatpush2.bf16.xpose.msra.mxu0 0
        %1717 = vmatprep.mubr.bf16.mxu0 0
        %1718 = vmatmul.mubr.bf16.gmra.mxu0 %v1680
        %v1719 = vpop.f32.mrf.mxu0
        %v1720 = vadd.f32 %v555, %v1719
        %v1721 = vpop.f32.mrf.mxu0
        %v1722 = vpop.f32.mrf.mxu0
        %v1723 = vadd.f32 %v556, %v1722
        %v1724 = vpop.f32.mrf.mxu0
        %1725 = vdwg.mxu0
        %v1726 = vsel %vm814, %v1669, -inf
        %1727 = vmax.xlane.f32.xlu0 %v1726
        %v1728 = vpop.xlane.xlu0 %1727
        %v1729 = vsel %vm814, %v1672, -inf
        %1730 = vmax.xlane.f32.xlu0 %v1729
        %v1731 = vpop.xlane.xlu0 %1730
        %v1732 = vsel %vm814, %v1720, -inf
        %1733 = vmax.xlane.f32.xlu0 %v1732
        %v1734 = vpop.xlane.xlu0 %1733
        %v1735 = vsel %vm814, %v1723, -inf
        %1736 = vmax.xlane.f32.xlu0 %v1735
        %v1737 = vpop.xlane.xlu0 %1736
        %v1738 = vsub.f32 %v1669, %v1728
        %v1739 = vsub.f32 %v1672, %v1731
        %v1740 = vsub.f32 %v1720, %v1734
        %v1741 = vsub.f32 %v1723, %v1737
        %v1742 = vmul.f32 %v1738, 1.442695
        %v1743 = vpow.pop %v1742
        %v1744 = vmul.f32 %v1739, 1.442695
        %v1745 = vpow.pop %v1744
        %v1746 = vmul.f32 %v1740, 1.442695
        %v1747 = vpow.pop %v1746
        %v1748 = vmul.f32 %v1741, 1.442695
        %v1749 = vpow.pop %v1748
        %v1750 = vsel %vm814, %v1743, 0.0
        %1751 = vadd.xlane.f32.xlu0 %v1750
        %v1752 = vpop.xlane.xlu0 %1751
        %v1753 = vsel %vm814, %v1745, 0.0
        %1754 = vadd.xlane.f32.xlu0 %v1753
        %v1755 = vpop.xlane.xlu0 %1754
        %v1756 = vsel %vm814, %v1747, 0.0
        %1757 = vadd.xlane.f32.xlu0 %v1756
        %v1758 = vpop.xlane.xlu0 %1757
        %v1759 = vsel %vm814, %v1749, 0.0
        %1760 = vadd.xlane.f32.xlu0 %v1759
        %v1761 = vpop.xlane.xlu0 %1760
        %v1762 = vpack.c.bf16 %v1745, %v1743
        %v1763 = vpack.c.bf16 %v1749, %v1747
        %1764 = vrot.lane.b32.xlu0 %v711, 40
        %v1765 = vpop.permute.xlu0 %1764
        %v1768 = vsel %vm814, %v1762, 0
        %1770 = vmatprep.subr.bf16.mxu0 0
        %1771 = vmatpush1.bf16.msra.mxu0 0
        %1772 = vmatprep.subr.bf16.mxu0 0
        %1773 = vmatpush1.bf16.msra.mxu0 0
        %1774 = vmatprep.subr.bf16.mxu0 0
        %1775 = vmatpush1.bf16.msra.mxu0 0
        %1776 = vmatprep.subr.bf16.mxu0 0
        %1777 = vmatpush1.bf16.msra.mxu0 0
        %1778 = vmatprep.subr.bf16.mxu0 0
        %1779 = vmatpush1.bf16.msra.mxu0 0
        %1780 = vmatprep.subr.bf16.mxu0 0
        %1781 = vmatpush1.bf16.msra.mxu0 0
        %1782 = vmatprep.subr.bf16.mxu0 0
        %1783 = vmatpush1.bf16.msra.mxu0 0
        %1784 = vmatprep.subr.bf16.mxu0 0
        %1785 = vmatpush1.bf16.msra.mxu0 %v1765
        %1786 = vmatprep.subr.bf16.mxu0 0
        %1787 = vmatpush2.bf16.msra.mxu0 0
        %1788 = vmatprep.subr.bf16.mxu0 0
        %1789 = vmatpush2.bf16.msra.mxu0 0
        %1790 = vmatprep.subr.bf16.mxu0 0
        %1791 = vmatpush2.bf16.msra.mxu0 0
        %1792 = vmatprep.subr.bf16.mxu0 0
        %1793 = vmatpush2.bf16.msra.mxu0 0
        %1794 = vmatprep.subr.bf16.mxu0 0
        %1795 = vmatpush2.bf16.msra.mxu0 0
        %1796 = vmatprep.subr.bf16.mxu0 0
        %1797 = vmatpush2.bf16.msra.mxu0 0
        %1798 = vmatprep.subr.bf16.mxu0 0
        %1799 = vmatpush2.bf16.msra.mxu0 0
        %1800 = vmatprep.subr.bf16.mxu0 0
        %1801 = vmatpush2.bf16.msra.mxu0 0
        %1802 = vmatprep.mubr.bf16.mxu0 0
        %1803 = vmatmul.mubr.bf16.gmra.mxu0 %v1768
        %v1804 = vpop.f32.mrf.mxu0
        %v1805 = vadd.f32 0.0, %v1804
        %v1806 = vpop.f32.mrf.mxu0
        %v1807 = vpop.f32.mrf.mxu0
        %v1808 = vadd.f32 0.0, %v1807
        %v1809 = vpop.f32.mrf.mxu0
        %1810 = vdwg.mxu0
        %1811 = vrot.lane.b32.xlu0 %v712, 40
        %v1812 = vpop.permute.xlu0 %1811
        %v1815 = vsel %vm814, %v1763, 0
        %1817 = vmatprep.subr.bf16.mxu0 0
        %1818 = vmatpush1.bf16.msra.mxu0 0
        %1819 = vmatprep.subr.bf16.mxu0 0
        %1820 = vmatpush1.bf16.msra.mxu0 0
        %1821 = vmatprep.subr.bf16.mxu0 0
        %1822 = vmatpush1.bf16.msra.mxu0 0
        %1823 = vmatprep.subr.bf16.mxu0 0
        %1824 = vmatpush1.bf16.msra.mxu0 0
        %1825 = vmatprep.subr.bf16.mxu0 0
        %1826 = vmatpush1.bf16.msra.mxu0 0
        %1827 = vmatprep.subr.bf16.mxu0 0
        %1828 = vmatpush1.bf16.msra.mxu0 0
        %1829 = vmatprep.subr.bf16.mxu0 0
        %1830 = vmatpush1.bf16.msra.mxu0 0
        %1831 = vmatprep.subr.bf16.mxu0 0
        %1832 = vmatpush1.bf16.msra.mxu0 %v1812
        %1833 = vmatprep.subr.bf16.mxu0 0
        %1834 = vmatpush2.bf16.msra.mxu0 0
        %1835 = vmatprep.subr.bf16.mxu0 0
        %1836 = vmatpush2.bf16.msra.mxu0 0
        %1837 = vmatprep.subr.bf16.mxu0 0
        %1838 = vmatpush2.bf16.msra.mxu0 0
        %1839 = vmatprep.subr.bf16.mxu0 0
        %1840 = vmatpush2.bf16.msra.mxu0 0
        %1841 = vmatprep.subr.bf16.mxu0 0
        %1842 = vmatpush2.bf16.msra.mxu0 0
        %1843 = vmatprep.subr.bf16.mxu0 0
        %1844 = vmatpush2.bf16.msra.mxu0 0
        %1845 = vmatprep.subr.bf16.mxu0 0
        %1846 = vmatpush2.bf16.msra.mxu0 0
        %1847 = vmatprep.subr.bf16.mxu0 0
        %1848 = vmatpush2.bf16.msra.mxu0 0
        %1849 = vmatprep.mubr.bf16.mxu0 0
        %1850 = vmatmul.mubr.bf16.gmra.mxu0 %v1815
        %v1851 = vpop.f32.mrf.mxu0
        %v1852 = vadd.f32 0.0, %v1851
        %v1853 = vpop.f32.mrf.mxu0
        %v1854 = vpop.f32.mrf.mxu0
        %v1855 = vadd.f32 0.0, %v1854
        %v1856 = vpop.f32.mrf.mxu0
        %1857 = vdwg.mxu0
        %v1858 = vrcp.pop %v1752
        %v1859 = vrcp.pop %v1755
        %v1860 = vrcp.pop %v1758
        %v1861 = vrcp.pop %v1761
        %v1862 = vmul.f32 %v1805, %v1858
        %v1863 = vmul.f32 %v1808, %v1859
        %v1864 = vmul.f32 %v1852, %v1860
        %v1865 = vmul.f32 %v1855, %v1861
        %v1866 = vpack.c.bf16 %v1863, %v1862
        %v1867 = vpack.c.bf16 %v1865, %v1864
        %v1869 = vsel %vm716, %v1866, 0
        %v1872 = vsel %vm716, %v1867, 0
        %v1875 = vsel %vm1207, %v710, 0
        %1877 = vmatprep.subr.bf16.mxu0 0
        %1878 = vmatpush1.bf16.msra.mxu0 0
        %1879 = vmatprep.subr.bf16.mxu0 0
        %1880 = vmatpush1.bf16.msra.mxu0 0
        %1881 = vmatprep.subr.bf16.mxu0 0
        %1882 = vmatpush1.bf16.msra.mxu0 0
        %1883 = vmatprep.subr.bf16.mxu0 0
        %1884 = vmatpush1.bf16.msra.mxu0 0
        %1885 = vmatprep.subr.bf16.mxu0 0
        %1886 = vmatpush1.bf16.msra.mxu0 0
        %1887 = vmatprep.subr.bf16.mxu0 0
        %1888 = vmatpush1.bf16.msra.mxu0 0
        %1889 = vmatprep.subr.bf16.mxu0 0
        %1890 = vmatpush1.bf16.msra.mxu0 0
        %1891 = vmatprep.subr.bf16.mxu0 0
        %1892 = vmatpush1.bf16.msra.mxu0 %v1875
        %1893 = vmatprep.subr.bf16.mxu0 0
        %1894 = vmatpush2.bf16.msra.mxu0 0
        %1895 = vmatprep.subr.bf16.mxu0 0
        %1896 = vmatpush2.bf16.msra.mxu0 0
        %1897 = vmatprep.subr.bf16.mxu0 0
        %1898 = vmatpush2.bf16.msra.mxu0 0
        %1899 = vmatprep.subr.bf16.mxu0 0
        %1900 = vmatpush2.bf16.msra.mxu0 0
        %1901 = vmatprep.subr.bf16.mxu0 0
        %1902 = vmatpush2.bf16.msra.mxu0 0
        %1903 = vmatprep.subr.bf16.mxu0 0
        %1904 = vmatpush2.bf16.msra.mxu0 0
        %1905 = vmatprep.subr.bf16.mxu0 0
        %1906 = vmatpush2.bf16.msra.mxu0 0
        %1907 = vmatprep.subr.bf16.mxu0 0
        %1908 = vmatpush2.bf16.msra.mxu0 0
        %1909 = vmatprep.mubr.bf16.mxu0 0
        %1910 = vmatmul.mubr.bf16.gmra.mxu0 %v1869
        %v1911 = vpop.f32.mrf.mxu0
        %v1912 = vadd.f32 0.0, %v1911
        %v1913 = vpop.f32.mrf.mxu0
        %v1914 = vpop.f32.mrf.mxu0
        %v1915 = vadd.f32 0.0, %v1914
        %v1916 = vpop.f32.mrf.mxu0
        %1917 = vmatprep.mubr.bf16.mxu0 0
        %1918 = vmatmul.mubr.bf16.gmra.mxu0 %v1872
        %v1919 = vpop.f32.mrf.mxu0
        %v1920 = vadd.f32 0.0, %v1919
        %v1921 = vpop.f32.mrf.mxu0
        %v1922 = vpop.f32.mrf.mxu0
        %v1923 = vadd.f32 0.0, %v1922
        %v1924 = vpop.f32.mrf.mxu0
        %1925 = vdwg.mxu0
        %v1926 = vadd.f32 %v1620, %v1912
        %v1927 = vadd.f32 %v1621, %v1915
        %v1928 = vadd.f32 %v1622, %v1920
        %v1929 = vadd.f32 %v1623, %v1923
        %v1930 = vlaneseq
        %v1931 = vshrl.u32 %v1930, 7
        %v1932 = vsub.s32 2, %v1931
        %v1933 = vrot.slane %v536, %v1932
        %v1934 = vadd.f32 %v1926, %v1933
        %v1935 = vadd.f32 %v1927, %v1933
        %v1936 = vadd.f32 %v1928, %v1933
        %v1937 = vadd.f32 %v1929, %v1933
        %v1938 = vadd.f32 %v532, %v1934
        %v1939 = vadd.f32 %v533, %v1935
        %v1940 = vadd.f32 %v534, %v1936
        %v1941 = vadd.f32 %v535, %v1937
        %v1942 = vsel %vm557, %v1938, 0.0
        %1943 = vadd.xlane.f32.xlu0 %v1942
        %v1944 = vpop.xlane.xlu0 %1943
        %v1945 = vsel %vm557, %v1939, 0.0
        %1946 = vadd.xlane.f32.xlu0 %v1945
        %v1947 = vpop.xlane.xlu0 %1946
        %v1948 = vsel %vm557, %v1940, 0.0
        %1949 = vadd.xlane.f32.xlu0 %v1948
        %v1950 = vpop.xlane.xlu0 %1949
        %v1951 = vsel %vm557, %v1941, 0.0
        %1952 = vadd.xlane.f32.xlu0 %v1951
        %v1953 = vpop.xlane.xlu0 %1952
        %v1954 = vmul.f32 %v1944, %v570
        %v1955 = vmul.f32 %v1947, %v570
        %v1956 = vmul.f32 %v1950, %v570
        %v1957 = vmul.f32 %v1953, %v570
        %v1958 = vsub.f32 %v1938, %v1954
        %v1959 = vsub.f32 %v1939, %v1955
        %v1960 = vsub.f32 %v1940, %v1956
        %v1961 = vsub.f32 %v1941, %v1957
        %v1962 = vmul.f32 %v1958, %v1958
        %v1963 = vmul.f32 %v1959, %v1959
        %v1964 = vmul.f32 %v1960, %v1960
        %v1965 = vmul.f32 %v1961, %v1961
        %v1966 = vsel %vm557, %v1962, 0.0
        %1967 = vadd.xlane.f32.xlu0 %v1966
        %v1968 = vpop.xlane.xlu0 %1967
        %v1969 = vsel %vm557, %v1963, 0.0
        %1970 = vadd.xlane.f32.xlu0 %v1969
        %v1971 = vpop.xlane.xlu0 %1970
        %v1972 = vsel %vm557, %v1964, 0.0
        %1973 = vadd.xlane.f32.xlu0 %v1972
        %v1974 = vpop.xlane.xlu0 %1973
        %v1975 = vsel %vm557, %v1965, 0.0
        %1976 = vadd.xlane.f32.xlu0 %v1975
        %v1977 = vpop.xlane.xlu0 %1976
        %v1978 = vmul.f32 %v1968, %v570
        %v1979 = vmul.f32 %v1971, %v570
        %v1980 = vmul.f32 %v1974, %v570
        %v1981 = vmul.f32 %v1977, %v570
        %v1982 = vadd.f32 %v1978, 1e-05
        %v1983 = vadd.f32 %v1979, 1e-05
        %v1984 = vadd.f32 %v1980, 1e-05
        %v1985 = vadd.f32 %v1981, 1e-05
        %v1986 = vrsqrt.pop %v1982
        %v1987 = vrsqrt.pop %v1983
        %v1988 = vrsqrt.pop %v1984
        %v1989 = vrsqrt.pop %v1985
        %v1990 = vmul.f32 %v1958, %v1986
        %v1991 = vmul.f32 %v1959, %v1987
        %v1992 = vmul.f32 %v1960, %v1988
        %v1993 = vmul.f32 %v1961, %v1989
        %v1994 = vlaneseq
        %v1995 = vshrl.u32 %v1994, 7
        %v1996 = vsub.s32 3, %v1995
        %v1997 = vrot.slane %v536, %v1996
        %v1998 = vmul.f32 %v1990, %v1997
        %v1999 = vmul.f32 %v1991, %v1997
        %v2000 = vmul.f32 %v1992, %v1997
        %v2001 = vmul.f32 %v1993, %v1997
        %v2002 = vlaneseq
        %v2003 = vshrl.u32 %v2002, 7
        %v2004 = vsub.s32 4, %v2003
        %v2005 = vrot.slane %v536, %v2004
        %v2006 = vadd.f32 %v1998, %v2005
        %v2007 = vadd.f32 %v1999, %v2005
        %v2008 = vadd.f32 %v2000, %v2005
        %v2009 = vadd.f32 %v2001, %v2005
        %v2010 = vpack.c.bf16 %v2007, %v2006
        %v2011 = vpack.c.bf16 %v2009, %v2008
        %v2012 = vld [vmem:[%s508] sm:$0xf]
        %v2013 = vld [vmem:[%s508 + $0x4] sm:$0xf]
        %v2014 = vld [vmem:[%s508 + $0x8] sm:$0xf]
        %v2015 = vld [vmem:[%s508 + $0xc] sm:$0xf]
        %v2016 = vld [vmem:[%s511] sm:$0x1]
        %v2018 = vlaneseq
        %v2019 = vshrl.u32 %v2018, 7
        %v2020 = vsub.s32 0, %v2019
        %v2021 = vrot.slane %v2016, %v2020
        %v2027 = vunpack.c.l.b16 %v2012
        %v2028 = vunpack.c.l.b16 %v2013
        %v2029 = vunpack.c.l.b16 %v2014
        %v2030 = vunpack.c.l.b16 %v2015
        %v2031 = vpack.c.b16 %v2028, %v2027
        %v2032 = vpack.c.b16 %v2030, %v2029
        %v2036 = vsel %vm557, %v2010, 0
        %v2039 = vsel %vm557, %v2011, 0
        %2041 = vmatprep.subr.bf16.mxu0 0
        %2042 = vmatpush1.bf16.msra.mxu0 0
        %2043 = vmatprep.subr.bf16.mxu0 0
        %2044 = vmatpush1.bf16.msra.mxu0 0
        %2045 = vmatprep.subr.bf16.mxu0 0
        %2046 = vmatpush1.bf16.msra.mxu0 0
        %2047 = vmatprep.subr.bf16.mxu0 0
        %2048 = vmatpush1.bf16.msra.mxu0 0
        %2049 = vmatprep.subr.bf16.mxu0 0
        %2050 = vmatpush1.bf16.msra.mxu0 0
        %2051 = vmatprep.subr.bf16.mxu0 0
        %2052 = vmatpush1.bf16.msra.mxu0 0
        %2053 = vmatprep.subr.bf16.mxu0 0
        %2054 = vmatpush1.bf16.msra.mxu0 %v2032
        %2055 = vmatprep.subr.bf16.mxu0 0
        %2056 = vmatpush1.bf16.msra.mxu0 %v2031
        %2057 = vmatprep.subr.bf16.mxu0 0
        %2058 = vmatpush2.bf16.msra.mxu0 0
        %2059 = vmatprep.subr.bf16.mxu0 0
        %2060 = vmatpush2.bf16.msra.mxu0 0
        %2061 = vmatprep.subr.bf16.mxu0 0
        %2062 = vmatpush2.bf16.msra.mxu0 0
        %2063 = vmatprep.subr.bf16.mxu0 0
        %2064 = vmatpush2.bf16.msra.mxu0 0
        %2065 = vmatprep.subr.bf16.mxu0 0
        %2066 = vmatpush2.bf16.msra.mxu0 0
        %2067 = vmatprep.subr.bf16.mxu0 0
        %2068 = vmatpush2.bf16.msra.mxu0 0
        %2069 = vmatprep.subr.bf16.mxu0 0
        %2070 = vmatpush2.bf16.msra.mxu0 0
        %2071 = vmatprep.subr.bf16.mxu0 0
        %2072 = vmatpush2.bf16.msra.mxu0 0
        %2073 = vmatprep.mubr.bf16.mxu0 0
        %2074 = vmatmul.mubr.bf16.gmra.mxu0 %v2036
        %v2075 = vpop.f32.mrf.mxu0
        %v2076 = vadd.f32 %v2021, %v2075
        %v2077 = vpop.f32.mrf.mxu0
        %v2078 = vpop.f32.mrf.mxu0
        %v2079 = vadd.f32 %v2021, %v2078
        %v2080 = vpop.f32.mrf.mxu0
        %2081 = vmatprep.mubr.bf16.mxu0 0
        %2082 = vmatmul.mubr.bf16.gmra.mxu0 %v2039
        %v2083 = vpop.f32.mrf.mxu0
        %v2084 = vadd.f32 %v2021, %v2083
        %v2085 = vpop.f32.mrf.mxu0
        %v2086 = vpop.f32.mrf.mxu0
        %v2087 = vadd.f32 %v2021, %v2086
        %v2088 = vpop.f32.mrf.mxu0
        %2089 = vdwg.mxu0
        %v2090 = vmul.f32 %v2076, 1.702
        %v2091 = vmul.f32 %v2079, 1.702
        %v2092 = vmul.f32 %v2084, 1.702
        %v2093 = vmul.f32 %v2087, 1.702
        %v2094 = vxor.u32 %v2090, 2147483648
        %v2095 = vxor.u32 %v2091, 2147483648
        %v2096 = vxor.u32 %v2092, 2147483648
        %v2097 = vxor.u32 %v2093, 2147483648
        %v2098 = vmul.f32 %v2094, 1.442695
        %v2099 = vpow.pop %v2098
        %v2100 = vmul.f32 %v2095, 1.442695
        %v2101 = vpow.pop %v2100
        %v2102 = vmul.f32 %v2096, 1.442695
        %v2103 = vpow.pop %v2102
        %v2104 = vmul.f32 %v2097, 1.442695
        %v2105 = vpow.pop %v2104
        %v2106 = vadd.f32 %v2099, 1.0
        %v2107 = vadd.f32 %v2101, 1.0
        %v2108 = vadd.f32 %v2103, 1.0
        %v2109 = vadd.f32 %v2105, 1.0
        %v2110 = vrcp.pop %v2106
        %v2111 = vmul.f32 1.0, %v2110
        %v2112 = vrcp.pop %v2107
        %v2113 = vmul.f32 1.0, %v2112
        %v2114 = vrcp.pop %v2108
        %v2115 = vmul.f32 1.0, %v2114
        %v2116 = vrcp.pop %v2109
        %v2117 = vmul.f32 1.0, %v2116
        %v2118 = vmul.f32 %v2076, %v2111
        %v2119 = vmul.f32 %v2079, %v2113
        %v2120 = vmul.f32 %v2084, %v2115
        %v2121 = vmul.f32 %v2087, %v2117
        %v2122 = vpack.c.bf16 %v2119, %v2118
        %v2123 = vpack.c.bf16 %v2121, %v2120
        %v2124 = vld [vmem:[%s516] sm:$0xf]
        %v2125 = vld [vmem:[%s516 + $0x4] sm:$0xf]
        %v2126 = vld [vmem:[%s516 + $0x8] sm:$0xf]
        %v2127 = vld [vmem:[%s516 + $0xc] sm:$0xf]
        %v2128 = vld [vmem:[%s516 + $0x10] sm:$0xf]
        %v2129 = vld [vmem:[%s516 + $0x14] sm:$0xf]
        %v2130 = vld [vmem:[%s516 + $0x18] sm:$0xf]
        %v2131 = vld [vmem:[%s516 + $0x1c] sm:$0xf]
        %v2132 = vld [vmem:[%s516 + $0x20] sm:$0xf]
        %v2133 = vld [vmem:[%s516 + $0x24] sm:$0xf]
        %v2134 = vld [vmem:[%s516 + $0x28] sm:$0xf]
        %v2135 = vld [vmem:[%s516 + $0x2c] sm:$0xf]
        %v2136 = vld [vmem:[%s516 + $0x30] sm:$0xf]
        %v2137 = vld [vmem:[%s516 + $0x34] sm:$0xf]
        %v2138 = vld [vmem:[%s516 + $0x38] sm:$0xf]
        %v2139 = vld [vmem:[%s516 + $0x3c] sm:$0xf]
        %v2140 = vlaneseq
        %v2141 = vshrl.u32 %v2140, 7
        %v2142 = vsub.s32 5, %v2141
        %v2143 = vrot.slane %v536, %v2142
        %v2160 = vunpack.c.l.b16 %v2124
        %v2161 = vunpack.c.l.b16 %v2125
        %v2162 = vunpack.c.l.b16 %v2126
        %v2163 = vunpack.c.l.b16 %v2127
        %v2164 = vunpack.c.l.b16 %v2128
        %v2165 = vunpack.c.l.b16 %v2129
        %v2166 = vunpack.c.l.b16 %v2130
        %v2167 = vunpack.c.l.b16 %v2131
        %v2168 = vunpack.c.l.b16 %v2132
        %v2169 = vunpack.c.l.b16 %v2133
        %v2170 = vunpack.c.l.b16 %v2134
        %v2171 = vunpack.c.l.b16 %v2135
        %v2172 = vunpack.c.l.b16 %v2136
        %v2173 = vunpack.c.l.b16 %v2137
        %v2174 = vunpack.c.l.b16 %v2138
        %v2175 = vunpack.c.l.b16 %v2139
        %v2176 = vpack.c.b16 %v2161, %v2160
        %v2177 = vpack.c.b16 %v2163, %v2162
        %v2178 = vpack.c.b16 %v2165, %v2164
        %v2179 = vpack.c.b16 %v2167, %v2166
        %v2180 = vpack.c.b16 %v2169, %v2168
        %v2181 = vpack.c.b16 %v2171, %v2170
        %v2182 = vpack.c.b16 %v2173, %v2172
        %v2183 = vpack.c.b16 %v2175, %v2174
        %2192 = vmatprep.subr.bf16.mxu0 0
        %2193 = vmatpush1.bf16.msra.mxu0 %v2183
        %2194 = vmatprep.subr.bf16.mxu0 0
        %2195 = vmatpush1.bf16.msra.mxu0 %v2182
        %2196 = vmatprep.subr.bf16.mxu0 0
        %2197 = vmatpush1.bf16.msra.mxu0 %v2181
        %2198 = vmatprep.subr.bf16.mxu0 0
        %2199 = vmatpush1.bf16.msra.mxu0 %v2180
        %2200 = vmatprep.subr.bf16.mxu0 0
        %2201 = vmatpush1.bf16.msra.mxu0 %v2179
        %2202 = vmatprep.subr.bf16.mxu0 0
        %2203 = vmatpush1.bf16.msra.mxu0 %v2178
        %2204 = vmatprep.subr.bf16.mxu0 0
        %2205 = vmatpush1.bf16.msra.mxu0 %v2177
        %2206 = vmatprep.subr.bf16.mxu0 0
        %2207 = vmatpush1.bf16.msra.mxu0 %v2176
        %2208 = vmatprep.subr.bf16.mxu0 0
        %2209 = vmatpush2.bf16.msra.mxu0 0
        %2210 = vmatprep.subr.bf16.mxu0 0
        %2211 = vmatpush2.bf16.msra.mxu0 0
        %2212 = vmatprep.subr.bf16.mxu0 0
        %2213 = vmatpush2.bf16.msra.mxu0 0
        %2214 = vmatprep.subr.bf16.mxu0 0
        %2215 = vmatpush2.bf16.msra.mxu0 0
        %2216 = vmatprep.subr.bf16.mxu0 0
        %2217 = vmatpush2.bf16.msra.mxu0 0
        %2218 = vmatprep.subr.bf16.mxu0 0
        %2219 = vmatpush2.bf16.msra.mxu0 0
        %2220 = vmatprep.subr.bf16.mxu0 0
        %2221 = vmatpush2.bf16.msra.mxu0 0
        %2222 = vmatprep.subr.bf16.mxu0 0
        %2223 = vmatpush2.bf16.msra.mxu0 0
        %2224 = vmatprep.mubr.bf16.mxu0 0
        %2225 = vmatmul.mubr.bf16.gmra.mxu0 %v2122
        %v2226 = vpop.f32.mrf.mxu0
        %v2227 = vadd.f32 %v2143, %v2226
        %v2228 = vpop.f32.mrf.mxu0
        %v2229 = vpop.f32.mrf.mxu0
        %v2230 = vadd.f32 %v2143, %v2229
        %v2231 = vpop.f32.mrf.mxu0
        %2232 = vmatprep.mubr.bf16.mxu0 0
        %2233 = vmatmul.mubr.bf16.gmra.mxu0 %v2123
        %v2234 = vpop.f32.mrf.mxu0
        %v2235 = vadd.f32 %v2143, %v2234
        %v2236 = vpop.f32.mrf.mxu0
        %v2237 = vpop.f32.mrf.mxu0
        %v2238 = vadd.f32 %v2143, %v2237
        %v2239 = vpop.f32.mrf.mxu0
        %2240 = vdwg.mxu0
        %v2241 = vadd.f32 %v1938, %v2227
        %v2242 = vadd.f32 %v1939, %v2230
        %v2243 = vadd.f32 %v1940, %v2235
        %v2244 = vadd.f32 %v1941, %v2238
        %2245 = vst.msk [vmem:[#allocation5] sm:$0xff] %vm557, %v2241
        %2246 = vst.msk [vmem:[#allocation5 + $0x8] sm:$0xff] %vm557, %v2242
        %2247 = vst.msk [vmem:[#allocation5 + $0x10] sm:$0xff] %vm557, %v2243
        %2248 = vst.msk [vmem:[#allocation5 + $0x18] sm:$0xff] %vm557, %v2244
        // Predicated region
        $region69: #{tpu_custom_call.1} parent=59 // pred_check
          %p2249 = pneg %p308
        $region70: #{tpu_custom_call.1} parent=59 // pred_check_branch
          %2251 = sbr.rel (%p2249) target = $region72
        $region71: #{tpu_custom_call.1} parent=59 // pred_region
          %s2252 = smul.u32 2, %s27
          %s2254 = ssub.s32 512, 512
          %2255 = vsyncadd [#allocation4], %s2254
          %s2256 = smul.addr %s2252, 2
          %s2257 = smul.addr %s2256, 128
          %s2258 = scalar_lea.hbm %s10, %s2257
          %s2259 = sshll.u32 [#allocation5], 4
          %s2260 = int_to_ptr.vmem [resolvable:$true] %s2259
          %2265 = dma.vmem_to_hbm [thread:$0]  %s2260, 512, %s2258, [#allocation4], 128, 128, 8
        $region72: #{tpu_custom_call.1} parent=59 // pred_fallthru
          _
        // Predicated region
        $region73: #{tpu_custom_call.1} parent=59 // pred_check
          %p2266 = pneg %p308
        $region74: #{tpu_custom_call.1} parent=59 // pred_check_branch
          %2268 = sbr.rel (%p2266) target = $region76
        $region75: #{tpu_custom_call.1} parent=59 // pred_region
          %2269 = dma.done [#allocation4], 512
        $region76: #{tpu_custom_call.1} parent=59 // pred_fallthru
          _
      $region60: #{tpu_custom_call.1} parent=5 // pred_fallthru
        _
      %p2270 = scmp.le.s32.totalorder 2, %s18
      // Predicated region
      $region77: #{tpu_custom_call.1} parent=5 // pred_check
        %p2271 = pneg %p2270
      $region78: #{tpu_custom_call.1} parent=5 // pred_check_branch
        %2273 = sbr.rel (%p2271) target = $region80
      $region79: #{tpu_custom_call.1} parent=5 // pred_region
        %s2274 = ssub.s32 %s18, 2
      $region80: #{tpu_custom_call.1} parent=5 // pred_fallthru
        _
    $region6: #{tpu_custom_call.1} parent=1 // loop_footer
      %s22 = sadd.s32 1, %s18
    $region7: #{tpu_custom_call.1} parent=1 // loop_footer_branch
      %17 = sbr.rel target = $region3
    $region8: #{tpu_custom_call.1} parent=1 // loop_exit
      _
    %2275 = vsyncpa [#allocation3], 1
    %s2276 = scalar_lea.sflag [#allocation3], 1
    %2277 = vsyncpa %s2276, 1
    %2278 = vsyncpa [#allocation4], 1
    %s2279 = scalar_lea.sflag [#allocation4], 1
    %2280 = vsyncpa %s2279, 1

</llo_original>
